<compile_context>
chip_gen: v5e
topology: v5e:2x2
jax: 0.10.0
libtpu: 0.0.40
codegen_flags: <defaults>
</compile_context>

<pallas_src>
import jax
import jax.numpy as jnp
from jax.experimental import pallas as pl
from jax.experimental.pallas import tpu as pltpu


# ------------------------- in-kernel recurrences -------------------------

def _lstm_time_loop(gi_f, gi_r, whh_f, whh_r, out_ref, h_f, c_f, h_r, c_r):
    """Serial bidirectional LSTM recurrence.

    gi_* (scratch refs, (T*B, 4H)) already hold x @ Wih + bih + bhh for every
    time step; only h @ Whh + gates remain on the serial critical path.
    Writes fwd hidden into out_ref[:, :H] and rev hidden into out_ref[:, H:2H],
    row t*B:(t+1)*B == time step t.
    """
    B, H = h_f.shape
    T = gi_f.shape[0] // B

    h_f[...] = jnp.zeros_like(h_f)
    c_f[...] = jnp.zeros_like(c_f)
    h_r[...] = jnp.zeros_like(h_r)
    c_r[...] = jnp.zeros_like(c_r)

    def cell(gates_in, h, c, whh):
        g = gates_in + jnp.dot(h, whh, preferred_element_type=jnp.float32)
        i = jax.nn.sigmoid(g[:, 0 * H:1 * H])
        f = jax.nn.sigmoid(g[:, 1 * H:2 * H])
        gg = jnp.tanh(g[:, 2 * H:3 * H])
        o = jax.nn.sigmoid(g[:, 3 * H:4 * H])
        c_new = f * c + i * gg
        return o * jnp.tanh(c_new), c_new

    @pl.loop(0, T)
    def _(t):
        rf = pl.multiple_of(t * B, B)               # forward dir: time t
        rr = pl.multiple_of((T - 1 - t) * B, B)     # reverse dir: time T-1-t
        hn, cn = cell(gi_f[pl.ds(rf, B), :], h_f[...], c_f[...], whh_f)
        h_f[...] = hn
        c_f[...] = cn
        out_ref[pl.ds(rf, B), 0:H] = hn
        hn, cn = cell(gi_r[pl.ds(rr, B), :], h_r[...], c_r[...], whh_r)
        h_r[...] = hn
        c_r[...] = cn
        out_ref[pl.ds(rr, B), H:2 * H] = hn


def _gru_time_loop(gi_f, gi_r, whh_f, bhh_f, whh_r, bhh_r, h_f, h_r,
                   emit_f, emit_r):
    """Serial bidirectional GRU recurrence.

    gi_* already hold x @ Wih + bih; bhh stays in the recurrence because the
    new-gate uses r * (Whh h + bhh_n) (PyTorch GRU form).  emit_f/emit_r(row, h)
    decide what to do with each produced hidden (store sequence / running max).
    """
    B, H = h_f.shape
    T = gi_f.shape[0] // B

    h_f[...] = jnp.zeros_like(h_f)
    h_r[...] = jnp.zeros_like(h_r)

    def cell(gi_t, h, whh, bhh):
        gh = jnp.dot(h, whh, preferred_element_type=jnp.float32) + bhh
        r = jax.nn.sigmoid(gi_t[:, 0:H] + gh[:, 0:H])
        z = jax.nn.sigmoid(gi_t[:, H:2 * H] + gh[:, H:2 * H])
        n = jnp.tanh(gi_t[:, 2 * H:3 * H] + r * gh[:, 2 * H:3 * H])
        return (1.0 - z) * n + z * h

    @pl.loop(0, T)
    def _(t):
        rf = pl.multiple_of(t * B, B)
        rr = pl.multiple_of((T - 1 - t) * B, B)
        hn = cell(gi_f[pl.ds(rf, B), :], h_f[...], whh_f, bhh_f)
        h_f[...] = hn
        emit_f(rf, hn)
        hn = cell(gi_r[pl.ds(rr, B), :], h_r[...], whh_r, bhh_r)
        h_r[...] = hn
        emit_r(rr, hn)


# ------------------------- Pallas kernels -------------------------

def _lstm_stack_kernel(emb_ref,
                       wih1f, whh1f, b1f, wih1r, whh1r, b1r,
                       wih2f, whh2f, b2f, wih2r, whh2r, b2r,
                       out_ref,
                       gi_f, gi_r, mid, h_f, c_f, h_r, c_r):
    """Fused 2-layer bidirectional LSTM: (T*B, E) -> (T*B, 2H)."""
    f32 = jnp.float32
    # ---- layer 1: hoisted input GEMM over all T*B rows, then serial recurrence
    emb = emb_ref[...]
    gi_f[...] = jnp.dot(emb, wih1f[...], preferred_element_type=f32) + b1f[...]
    gi_r[...] = jnp.dot(emb, wih1r[...], preferred_element_type=f32) + b1r[...]
    _lstm_time_loop(gi_f, gi_r, whh1f[...], whh1r[...], mid, h_f, c_f, h_r, c_r)
    # ---- layer 2: input = layer-1 output, kept in VMEM (no HBM round trip)
    x2 = mid[...]
    gi_f[...] = jnp.dot(x2, wih2f[...], preferred_element_type=f32) + b2f[...]
    gi_r[...] = jnp.dot(x2, wih2r[...], preferred_element_type=f32) + b2r[...]
    _lstm_time_loop(gi_f, gi_r, whh2f[...], whh2r[...], out_ref,
                    h_f, c_f, h_r, c_r)


def _gru_head_kernel(emb_ref, lstm_ref,
                     wih1f, whh1f, bih1f, bhh1f,
                     wih1r, whh1r, bih1r, bhh1r,
                     wih2f, whh2f, bih2f, bhh2f,
                     wih2r, whh2r, bih2r, bhh2r,
                     w1_ref, b1_ref, w2_ref, b2_ref,
                     out_ref,
                     gi_f, gi_r, mid, h_f, h_r, max_scr):
    """Fused 2-layer bidirectional GRU + (lstm+gru).max(time) + dense head."""
    f32 = jnp.float32
    B, H = h_f.shape
    E = emb_ref.shape[1]

    emb = emb_ref[...]                     # (T*B, E)
    lstm = lstm_ref[...]                   # (T*B, 2H)

    # ---- GRU layer 1: input = concat(embeds, lstm_out) done as a split GEMM
    gi_f[...] = (jnp.dot(emb, wih1f[0:E, :], preferred_element_type=f32)
                 + jnp.dot(lstm, wih1f[E:E + 2 * H, :], preferred_element_type=f32)
                 + bih1f[...])
    gi_r[...] = (jnp.dot(emb, wih1r[0:E, :], preferred_element_type=f32)
                 + jnp.dot(lstm, wih1r[E:E + 2 * H, :], preferred_element_type=f32)
                 + bih1r[...])

    def emit_mid_f(row, h):
        mid[pl.ds(row, B), 0:H] = h

    def emit_mid_r(row, h):
        mid[pl.ds(row, B), H:2 * H] = h

    _gru_time_loop(gi_f, gi_r, whh1f[...], bhh1f[...], whh1r[...], bhh1r[...],
                   h_f, h_r, emit_mid_f, emit_mid_r)

    # ---- GRU layer 2 fused with the running max of (lstm_t + gru_t):
    #      gru_out is never materialised.
    x2 = mid[...]
    gi_f[...] = jnp.dot(x2, wih2f[...], preferred_element_type=f32) + bih2f[...]
    gi_r[...] = jnp.dot(x2, wih2r[...], preferred_element_type=f32) + bih2r[...]

    max_scr[...] = jnp.full(max_scr.shape, -jnp.inf, max_scr.dtype)

    def emit_max_f(row, h):
        max_scr[:, 0:H] = jnp.maximum(max_scr[:, 0:H],
                                      lstm_ref[pl.ds(row, B), 0:H] + h)

    def emit_max_r(row, h):
        max_scr[:, H:2 * H] = jnp.maximum(max_scr[:, H:2 * H],
                                          lstm_ref[pl.ds(row, B), H:2 * H] + h)

    _gru_time_loop(gi_f, gi_r, whh2f[...], bhh2f[...], whh2r[...], bhh2r[...],
                   h_f, h_r, emit_max_f, emit_max_r)

    # ---- fused head: dense1 (BatchNorm pre-folded) -> relu -> dense2 -> sigmoid
    m = max_scr[...]                                       # (B, 2H)
    h1 = jnp.dot(m, w1_ref[...], preferred_element_type=f32) + b1_ref[...]
    h1 = jnp.maximum(h1, 0.0)
    h2 = jnp.dot(h1, w2_ref[...], preferred_element_type=f32) + b2_ref[...]
    out_ref[...] = jax.nn.sigmoid(h2)                      # (B, 1)


# ------------------------- wrappers -------------------------

def _lstm_stack(emb_flat, lstm_params, T, B, H):
    (l1f, l1r), (l2f, l2r) = lstm_params

    def fold(p):                                  # LSTM: bih + bhh folded once
        wih_t, whh_t, bih, bhh = p
        return (wih_t, whh_t, bih + bhh)

    l1f, l1r, l2f, l2r = fold(l1f), fold(l1r), fold(l2f), fold(l2r)
    G = 4 * H
    return pl.pallas_call(
        _lstm_stack_kernel,
        out_shape=jax.ShapeDtypeStruct((T * B, 2 * H), jnp.float32),
        scratch_shapes=[
            pltpu.VMEM((T * B, G), jnp.float32),      # gi fwd (hoisted input GEMM)
            pltpu.VMEM((T * B, G), jnp.float32),      # gi rev
            pltpu.VMEM((T * B, 2 * H), jnp.float32),  # layer-1 output (VMEM only)
            pltpu.VMEM((B, H), jnp.float32),          # h fwd
            pltpu.VMEM((B, H), jnp.float32),          # c fwd
            pltpu.VMEM((B, H), jnp.float32),          # h rev
            pltpu.VMEM((B, H), jnp.float32),          # c rev
        ],
    )(emb_flat, *l1f, *l1r, *l2f, *l2r)


def _gru_head(emb_flat, lstm_flat, gru_params, head_params, T, B, H):
    (g1f, g1r), (g2f, g2r) = gru_params
    w1, b1, gamma, beta, mean, var, w2, b2 = head_params
    # Fold BatchNorm1d (eval mode, running stats) into dense1.
    scale = gamma * jax.lax.rsqrt(var + 1e-5)             # (1, H)
    w1f = w1 * scale                                      # (2H, H)
    b1f = (b1 - mean) * scale + beta                      # (1, H)
    G = 3 * H
    out = pl.pallas_call(
        _gru_head_kernel,
        out_shape=jax.ShapeDtypeStruct((B, 1), jnp.float32),
        scratch_shapes=[
            pltpu.VMEM((T * B, G), jnp.float32),      # gi fwd
            pltpu.VMEM((T * B, G), jnp.float32),      # gi rev
            pltpu.VMEM((T * B, 2 * H), jnp.float32),  # GRU layer-1 output
            pltpu.VMEM((B, H), jnp.float32),          # h fwd
            pltpu.VMEM((B, H), jnp.float32),          # h rev
            pltpu.VMEM((B, 2 * H), jnp.float32),      # running max of lstm+gru
        ],
    )(emb_flat, lstm_flat, *g1f, *g1r, *g2f, *g2r, w1f, b1f, w2, b2)
    return out[:, 0]                                      # == out.squeeze()


def lstm_classifier_forward(x, params):
    H = params['H']
    xt = x.T                                              # (T+1, B)
    _lengths = xt[0, :]                                   # unused, as in reference
    reviews = xt[1:, :]                                   # (T, B) int tokens
    T, B = reviews.shape
    emb = jnp.take(params['embedding'], reviews, axis=0)  # (T, B, E)
    emb_flat = emb.reshape(T * B, emb.shape[-1])          # (T*B, E), row t*B+b = (t, b)
    lstm_flat = _lstm_stack(emb_flat, params['lstm'], T, B, H)   # (T*B, 2H)
    return _gru_head(emb_flat, lstm_flat, params['gru'], params['head'], T, B, H)


# ------------------------- parameters -------------------------

def init_params(key, embedding_dim, hidden_dim, vocab_size):
    E, H, V = embedding_dim, hidden_dim, vocab_size
    keys = iter(jax.random.split(key, 64))

    def nrm(shape, scale=0.1):
        return jax.random.normal(next(keys), shape, jnp.float32) * scale

    emb = nrm((V, E), 1.0).at[0].set(0.0)                 # padding_idx=0 -> zero row

    def rnn_dir_params(in_dim, n_gates):
        G = n_gates * H
        wih = nrm((G, in_dim))                            # PyTorch layout (G, in)
        whh = nrm((G, H))
        bih = nrm((G,))
        bhh = nrm((G,))
        return (wih.T, whh.T, bih.reshape(1, G), bhh.reshape(1, G))

    lstm_layers, in_dim = [], E
    for _ in range(2):
        lstm_layers.append((rnn_dir_params(in_dim, 4), rnn_dir_params(in_dim, 4)))
        in_dim = 2 * H
    gru_layers, in_dim = [], E + 2 * H
    for _ in range(2):
        gru_layers.append((rnn_dir_params(in_dim, 3), rnn_dir_params(in_dim, 3)))
        in_dim = 2 * H

    w1 = nrm((H, 2 * H)).T                                # dense1 stored as (2H, H)
    b1 = nrm((1, H))
    gamma = jnp.ones((1, H), jnp.float32)                 # bn1 weight
    beta = jnp.zeros((1, H), jnp.float32)                 # bn1 bias
    mean = jnp.zeros((1, H), jnp.float32)                 # bn1 running_mean
    var = jnp.ones((1, H), jnp.float32)                   # bn1 running_var
    w2 = nrm((1, H)).T                                    # dense2 stored as (H, 1)
    b2 = nrm((1, 1))
    return {'embedding': emb, 'lstm': lstm_layers, 'gru': gru_layers,
            'head': (w1, b1, gamma, beta, mean, var, w2, b2), 'H': H}


# ------------------------- pure-JAX reference (for validation) -------------------------

def _dot_hp(a, b):
    return jnp.dot(a, b, precision=jax.lax.Precision.HIGHEST)


def _ref_dir(x_seq, wih_t, whh_t, bih, bhh, H, reverse, cell):
    xs = x_seq[::-1] if reverse else x_seq
    B = x_seq.shape[1]

    def lstm_step(carry, x):
        h, c = carry
        g = _dot_hp(x, wih_t) + bih[0] + _dot_hp(h, whh_t) + bhh[0]
        i = jax.nn.sigmoid(g[:, :H]); f = jax.nn.sigmoid(g[:, H:2 * H])
        gg = jnp.tanh(g[:, 2 * H:3 * H]); o = jax.nn.sigmoid(g[:, 3 * H:])
        c = f * c + i * gg
        h = o * jnp.tanh(c)
        return (h, c), h

    def gru_step(h, x):
        gi = _dot_hp(x, wih_t) + bih[0]
        gh = _dot_hp(h, whh_t) + bhh[0]
        r = jax.nn.sigmoid(gi[:, :H] + gh[:, :H])
        z = jax.nn.sigmoid(gi[:, H:2 * H] + gh[:, H:2 * H])
        n = jnp.tanh(gi[:, 2 * H:] + r * gh[:, 2 * H:])
        return (1 - z) * n + z * h, (1 - z) * n + z * h

    if cell == 'lstm':
        _, ys = jax.lax.scan(lstm_step,
                             (jnp.zeros((B, H)), jnp.zeros((B, H))), xs)
    else:
        _, ys = jax.lax.scan(gru_step, jnp.zeros((B, H)), xs)
    return ys[::-1] if reverse else ys


def _ref_stack(x_seq, layer_params, H, cell):
    out = x_seq
    for (pf, pr) in layer_params:
        of = _ref_dir(out, *pf, H, False, cell)
        orv = _ref_dir(out, *pr, H, True, cell)
        out = jnp.concatenate([of, orv], axis=-1)
    return out


def reference_forward(x, params):
    xt = x.T
    reviews = xt[1:, :]
    H = params['H']
    embeds = jnp.take(params['embedding'], reviews, axis=0)
    lstm_out = _ref_stack(embeds, params['lstm'], H, 'lstm')
    embeds_lstm = jnp.concatenate([embeds, lstm_out], axis=2)
    gru_out = _ref_stack(embeds_lstm, params['gru'], H, 'gru')
    s = jnp.max(lstm_out + gru_out, axis=0)
    w1, b1, gamma, beta, mean, var, w2, b2 = params['head']
    h1 = _dot_hp(s, w1) + b1
    h1 = (h1 - mean) * jax.lax.rsqrt(var + 1e-5) * gamma + beta
    h1 = jnp.maximum(h1, 0.0)
    h2 = _dot_hp(h1, w2) + b2
    return jax.nn.sigmoid(h2)[:, 0]


# ------------------------- main -------------------------

if __name__ == "__main__":
    B, T, E, H, V = 8, 8, 32, 32, 50
    key = jax.random.PRNGKey(0)
    k_tok, k_len, k_par = jax.random.split(key, 3)
    params = init_params(k_par, E, H, V)

    tokens = jax.random.randint(k_tok, (B, T), 0, V, dtype=jnp.int32)
    lengths = jax.random.randint(k_len, (B, 1), 1, T + 1, dtype=jnp.int32)
    x = jnp.concatenate([lengths, tokens], axis=1)        # (B, T+1) as the module expects

    out = jax.block_until_ready(lstm_classifier_forward(x, params))
    ref = jax.block_until_ready(reference_forward(x, params))

    assert out.shape == (B,), out.shape
    assert bool(jnp.all(jnp.isfinite(out)))
    assert bool(jnp.allclose(out, ref, atol=2e-3, rtol=2e-3)), (out, ref)
    print("KERNEL_OK")
</pallas_src>

<mosaic_0001>
module attributes {stable_mosaic.version = 11 : i64} {
  func.func @_lstm_stack_kernel(%arg0: memref<64x32xf32, #tpu.memory_space<vmem>>, %arg1: memref<32x128xf32, #tpu.memory_space<vmem>>, %arg2: memref<32x128xf32, #tpu.memory_space<vmem>>, %arg3: memref<1x128xf32, #tpu.memory_space<vmem>>, %arg4: memref<32x128xf32, #tpu.memory_space<vmem>>, %arg5: memref<32x128xf32, #tpu.memory_space<vmem>>, %arg6: memref<1x128xf32, #tpu.memory_space<vmem>>, %arg7: memref<64x128xf32, #tpu.memory_space<vmem>>, %arg8: memref<32x128xf32, #tpu.memory_space<vmem>>, %arg9: memref<1x128xf32, #tpu.memory_space<vmem>>, %arg10: memref<64x128xf32, #tpu.memory_space<vmem>>, %arg11: memref<32x128xf32, #tpu.memory_space<vmem>>, %arg12: memref<1x128xf32, #tpu.memory_space<vmem>>, %arg13: memref<64x64xf32, #tpu.memory_space<vmem>>, %arg14: memref<64x128xf32, #tpu.memory_space<vmem>>, %arg15: memref<64x128xf32, #tpu.memory_space<vmem>>, %arg16: memref<64x64xf32, #tpu.memory_space<vmem>>, %arg17: memref<8x32xf32, #tpu.memory_space<vmem>>, %arg18: memref<8x32xf32, #tpu.memory_space<vmem>>, %arg19: memref<8x32xf32, #tpu.memory_space<vmem>>, %arg20: memref<8x32xf32, #tpu.memory_space<vmem>>) attributes {dimension_semantics = [], scalar_prefetch = 0 : i64, scratch_operands = 7 : i64, tpu.core_type = #tpu.core_type<tc>} {
    %c0 = arith.constant 0 : index
    %c0_0 = arith.constant 0 : index
    %0 = vector.load %arg0[%c0, %c0_0] : memref<64x32xf32, #tpu.memory_space<vmem>>, vector<64x32xf32>
    %c0_1 = arith.constant 0 : index
    %c0_2 = arith.constant 0 : index
    %1 = vector.load %arg1[%c0_1, %c0_2] : memref<32x128xf32, #tpu.memory_space<vmem>>, vector<32x128xf32>
    %cst = arith.constant dense<0.000000e+00> : vector<64x128xf32>
    %2 = tpu.matmul %0, %1, %cst {dimension_numbers = #tpu.dot_dimension_numbers<[1], [0], [0], [1], [0, 0, 1, 1], [], []>} : vector<64x32xf32>, vector<32x128xf32>, vector<64x128xf32> -> vector<64x128xf32>
    %c0_3 = arith.constant 0 : index
    %c0_4 = arith.constant 0 : index
    %3 = vector.load %arg3[%c0_3, %c0_4] : memref<1x128xf32, #tpu.memory_space<vmem>>, vector<1x128xf32>
    %4 = vector.broadcast %3 : vector<1x128xf32> to vector<64x128xf32>
    %5 = arith.addf %2, %4 : vector<64x128xf32>
    %c0_5 = arith.constant 0 : index
    %c0_6 = arith.constant 0 : index
    %6 = vector.load %arg14[%c0_5, %c0_6] : memref<64x128xf32, #tpu.memory_space<vmem>>, vector<64x128xf32>
    tpu.vector_store %arg14[%c0_5, %c0_6], %5 {strides = array<i32>} : memref<64x128xf32, #tpu.memory_space<vmem>>, vector<64x128xf32>,
    %c0_7 = arith.constant 0 : index
    %c0_8 = arith.constant 0 : index
    %7 = vector.load %arg4[%c0_7, %c0_8] : memref<32x128xf32, #tpu.memory_space<vmem>>, vector<32x128xf32>
    %cst_9 = arith.constant dense<0.000000e+00> : vector<64x128xf32>
    %8 = tpu.matmul %0, %7, %cst_9 {dimension_numbers = #tpu.dot_dimension_numbers<[1], [0], [0], [1], [0, 0, 1, 1], [], []>} : vector<64x32xf32>, vector<32x128xf32>, vector<64x128xf32> -> vector<64x128xf32>
    %c0_10 = arith.constant 0 : index
    %c0_11 = arith.constant 0 : index
    %9 = vector.load %arg6[%c0_10, %c0_11] : memref<1x128xf32, #tpu.memory_space<vmem>>, vector<1x128xf32>
    %10 = vector.broadcast %9 : vector<1x128xf32> to vector<64x128xf32>
    %11 = arith.addf %8, %10 : vector<64x128xf32>
    %c0_12 = arith.constant 0 : index
    %c0_13 = arith.constant 0 : index
    %12 = vector.load %arg15[%c0_12, %c0_13] : memref<64x128xf32, #tpu.memory_space<vmem>>, vector<64x128xf32>
    tpu.vector_store %arg15[%c0_12, %c0_13], %11 {strides = array<i32>} : memref<64x128xf32, #tpu.memory_space<vmem>>, vector<64x128xf32>,
    %c0_14 = arith.constant 0 : index
    %c0_15 = arith.constant 0 : index
    %13 = vector.load %arg2[%c0_14, %c0_15] : memref<32x128xf32, #tpu.memory_space<vmem>>, vector<32x128xf32>
    %c0_16 = arith.constant 0 : index
    %c0_17 = arith.constant 0 : index
    %14 = vector.load %arg5[%c0_16, %c0_17] : memref<32x128xf32, #tpu.memory_space<vmem>>, vector<32x128xf32>
    %cst_18 = arith.constant 0.000000e+00 : f32
    %15 = vector.broadcast %cst_18 : f32 to vector<8x32xf32>
    %c0_19 = arith.constant 0 : index
    %c0_20 = arith.constant 0 : index
    %16 = vector.load %arg17[%c0_19, %c0_20] : memref<8x32xf32, #tpu.memory_space<vmem>>, vector<8x32xf32>
    tpu.vector_store %arg17[%c0_19, %c0_20], %15 {strides = array<i32>} : memref<8x32xf32, #tpu.memory_space<vmem>>, vector<8x32xf32>,
    %cst_21 = arith.constant 0.000000e+00 : f32
    %17 = vector.broadcast %cst_21 : f32 to vector<8x32xf32>
    %c0_22 = arith.constant 0 : index
    %c0_23 = arith.constant 0 : index
    %18 = vector.load %arg18[%c0_22, %c0_23] : memref<8x32xf32, #tpu.memory_space<vmem>>, vector<8x32xf32>
    tpu.vector_store %arg18[%c0_22, %c0_23], %17 {strides = array<i32>} : memref<8x32xf32, #tpu.memory_space<vmem>>, vector<8x32xf32>,
    %cst_24 = arith.constant 0.000000e+00 : f32
    %19 = vector.broadcast %cst_24 : f32 to vector<8x32xf32>
    %c0_25 = arith.constant 0 : index
    %c0_26 = arith.constant 0 : index
    %20 = vector.load %arg19[%c0_25, %c0_26] : memref<8x32xf32, #tpu.memory_space<vmem>>, vector<8x32xf32>
    tpu.vector_store %arg19[%c0_25, %c0_26], %19 {strides = array<i32>} : memref<8x32xf32, #tpu.memory_space<vmem>>, vector<8x32xf32>,
    %cst_27 = arith.constant 0.000000e+00 : f32
    %21 = vector.broadcast %cst_27 : f32 to vector<8x32xf32>
    %c0_28 = arith.constant 0 : index
    %c0_29 = arith.constant 0 : index
    %22 = vector.load %arg20[%c0_28, %c0_29] : memref<8x32xf32, #tpu.memory_space<vmem>>, vector<8x32xf32>
    tpu.vector_store %arg20[%c0_28, %c0_29], %21 {strides = array<i32>} : memref<8x32xf32, #tpu.memory_space<vmem>>, vector<8x32xf32>,
    %c0_i32 = arith.constant 0 : i32
    %c8_i32 = arith.constant 8 : i32
    %23 = arith.addi %c0_i32, %c8_i32 : i32
    %c1_i32 = arith.constant 1 : i32
    scf.for %arg21 = %c0_i32 to %23 step %c1_i32  : i32 {
      %c1_i32_67 = arith.constant 1 : i32
      %48 = arith.muli %arg21, %c1_i32_67 : i32
      %c0_i32_68 = arith.constant 0 : i32
      %49 = arith.addi %c0_i32_68, %48 : i32
      %c8_i32_69 = arith.constant 8 : i32
      %50 = arith.muli %49, %c8_i32_69 : i32
      %51 = tpu.assume_multiple %50, 8 : i32
      %c7_i32 = arith.constant 7 : i32
      %52 = arith.subi %c7_i32, %49 : i32
      %c8_i32_70 = arith.constant 8 : i32
      %53 = arith.muli %52, %c8_i32_70 : i32
      %54 = tpu.assume_multiple %53, 8 : i32
      %55 = arith.index_cast %51 : i32 to index
      %c0_71 = arith.constant 0 : index
      %56 = vector.load %arg14[%55, %c0_71] : memref<64x128xf32, #tpu.memory_space<vmem>>, vector<8x128xf32>
      %c0_72 = arith.constant 0 : index
      %c0_73 = arith.constant 0 : index
      %57 = vector.load %arg17[%c0_72, %c0_73] : memref<8x32xf32, #tpu.memory_space<vmem>>, vector<8x32xf32>
      %c0_74 = arith.constant 0 : index
      %c0_75 = arith.constant 0 : index
      %58 = vector.load %arg18[%c0_74, %c0_75] : memref<8x32xf32, #tpu.memory_space<vmem>>, vector<8x32xf32>
      %cst_76 = arith.constant dense<0.000000e+00> : vector<8x128xf32>
      %59 = tpu.matmul %57, %13, %cst_76 {dimension_numbers = #tpu.dot_dimension_numbers<[1], [0], [0], [1], [0, 0, 1, 1], [], []>} : vector<8x32xf32>, vector<32x128xf32>, vector<8x128xf32> -> vector<8x128xf32>
      %60 = arith.addf %56, %59 : vector<8x128xf32>
      %61 = vector.extract_strided_slice %60 {offsets = [0, 0], sizes = [8, 32], strides = [1, 1]} : vector<8x128xf32> to vector<8x32xf32>
      %62 = arith.negf %61 : vector<8x32xf32>
      %63 = math.exp %62 : vector<8x32xf32>
      %cst_77 = arith.constant 1.000000e+00 : f32
      %64 = vector.broadcast %cst_77 : f32 to vector<8x32xf32>
      %65 = arith.addf %64, %63 : vector<8x32xf32>
      %66 = arith.divf %64, %65 : vector<8x32xf32>
      %67 = vector.extract_strided_slice %60 {offsets = [0, 32], sizes = [8, 32], strides = [1, 1]} : vector<8x128xf32> to vector<8x32xf32>
      %68 = arith.negf %67 : vector<8x32xf32>
      %69 = math.exp %68 : vector<8x32xf32>
      %cst_78 = arith.constant 1.000000e+00 : f32
      %70 = vector.broadcast %cst_78 : f32 to vector<8x32xf32>
      %71 = arith.addf %70, %69 : vector<8x32xf32>
      %72 = arith.divf %70, %71 : vector<8x32xf32>
      %73 = vector.extract_strided_slice %60 {offsets = [0, 64], sizes = [8, 32], strides = [1, 1]} : vector<8x128xf32> to vector<8x32xf32>
      %74 = math.tanh %73 : vector<8x32xf32>
      %75 = vector.extract_strided_slice %60 {offsets = [0, 96], sizes = [8, 32], strides = [1, 1]} : vector<8x128xf32> to vector<8x32xf32>
      %76 = arith.negf %75 : vector<8x32xf32>
      %77 = math.exp %76 : vector<8x32xf32>
      %cst_79 = arith.constant 1.000000e+00 : f32
      %78 = vector.broadcast %cst_79 : f32 to vector<8x32xf32>
      %79 = arith.addf %78, %77 : vector<8x32xf32>
      %80 = arith.divf %78, %79 : vector<8x32xf32>
      %81 = arith.mulf %72, %58 : vector<8x32xf32>
      %82 = arith.mulf %66, %74 : vector<8x32xf32>
      %83 = arith.addf %81, %82 : vector<8x32xf32>
      %84 = math.tanh %83 : vector<8x32xf32>
      %85 = arith.mulf %80, %84 : vector<8x32xf32>
      %c0_80 = arith.constant 0 : index
      %c0_81 = arith.constant 0 : index
      %86 = vector.load %arg17[%c0_80, %c0_81] : memref<8x32xf32, #tpu.memory_space<vmem>>, vector<8x32xf32>
      tpu.vector_store %arg17[%c0_80, %c0_81], %85 {strides = array<i32>} : memref<8x32xf32, #tpu.memory_space<vmem>>, vector<8x32xf32>,
      %c0_82 = arith.constant 0 : index
      %c0_83 = arith.constant 0 : index
      %87 = vector.load %arg18[%c0_82, %c0_83] : memref<8x32xf32, #tpu.memory_space<vmem>>, vector<8x32xf32>
      tpu.vector_store %arg18[%c0_82, %c0_83], %83 {strides = array<i32>} : memref<8x32xf32, #tpu.memory_space<vmem>>, vector<8x32xf32>,
      %88 = arith.index_cast %51 : i32 to index
      %c0_84 = arith.constant 0 : index
      %89 = vector.load %arg16[%88, %c0_84] : memref<64x64xf32, #tpu.memory_space<vmem>>, vector<8x32xf32>
      tpu.vector_store %arg16[%88, %c0_84], %85 {strides = array<i32>} : memref<64x64xf32, #tpu.memory_space<vmem>>, vector<8x32xf32>,
      %90 = arith.index_cast %54 : i32 to index
      %c0_85 = arith.constant 0 : index
      %91 = vector.load %arg15[%90, %c0_85] : memref<64x128xf32, #tpu.memory_space<vmem>>, vector<8x128xf32>
      %c0_86 = arith.constant 0 : index
      %c0_87 = arith.constant 0 : index
      %92 = vector.load %arg19[%c0_86, %c0_87] : memref<8x32xf32, #tpu.memory_space<vmem>>, vector<8x32xf32>
      %c0_88 = arith.constant 0 : index
      %c0_89 = arith.constant 0 : index
      %93 = vector.load %arg20[%c0_88, %c0_89] : memref<8x32xf32, #tpu.memory_space<vmem>>, vector<8x32xf32>
      %cst_90 = arith.constant dense<0.000000e+00> : vector<8x128xf32>
      %94 = tpu.matmul %92, %14, %cst_90 {dimension_numbers = #tpu.dot_dimension_numbers<[1], [0], [0], [1], [0, 0, 1, 1], [], []>} : vector<8x32xf32>, vector<32x128xf32>, vector<8x128xf32> -> vector<8x128xf32>
      %95 = arith.addf %91, %94 : vector<8x128xf32>
      %96 = vector.extract_strided_slice %95 {offsets = [0, 0], sizes = [8, 32], strides = [1, 1]} : vector<8x128xf32> to vector<8x32xf32>
      %97 = arith.negf %96 : vector<8x32xf32>
      %98 = math.exp %97 : vector<8x32xf32>
      %cst_91 = arith.constant 1.000000e+00 : f32
      %99 = vector.broadcast %cst_91 : f32 to vector<8x32xf32>
      %100 = arith.addf %99, %98 : vector<8x32xf32>
      %101 = arith.divf %99, %100 : vector<8x32xf32>
      %102 = vector.extract_strided_slice %95 {offsets = [0, 32], sizes = [8, 32], strides = [1, 1]} : vector<8x128xf32> to vector<8x32xf32>
      %103 = arith.negf %102 : vector<8x32xf32>
      %104 = math.exp %103 : vector<8x32xf32>
      %cst_92 = arith.constant 1.000000e+00 : f32
      %105 = vector.broadcast %cst_92 : f32 to vector<8x32xf32>
      %106 = arith.addf %105, %104 : vector<8x32xf32>
      %107 = arith.divf %105, %106 : vector<8x32xf32>
      %108 = vector.extract_strided_slice %95 {offsets = [0, 64], sizes = [8, 32], strides = [1, 1]} : vector<8x128xf32> to vector<8x32xf32>
      %109 = math.tanh %108 : vector<8x32xf32>
      %110 = vector.extract_strided_slice %95 {offsets = [0, 96], sizes = [8, 32], strides = [1, 1]} : vector<8x128xf32> to vector<8x32xf32>
      %111 = arith.negf %110 : vector<8x32xf32>
      %112 = math.exp %111 : vector<8x32xf32>
      %cst_93 = arith.constant 1.000000e+00 : f32
      %113 = vector.broadcast %cst_93 : f32 to vector<8x32xf32>
      %114 = arith.addf %113, %112 : vector<8x32xf32>
      %115 = arith.divf %113, %114 : vector<8x32xf32>
      %116 = arith.mulf %107, %93 : vector<8x32xf32>
      %117 = arith.mulf %101, %109 : vector<8x32xf32>
      %118 = arith.addf %116, %117 : vector<8x32xf32>
      %119 = math.tanh %118 : vector<8x32xf32>
      %120 = arith.mulf %115, %119 : vector<8x32xf32>
      %c0_94 = arith.constant 0 : index
      %c0_95 = arith.constant 0 : index
      %121 = vector.load %arg19[%c0_94, %c0_95] : memref<8x32xf32, #tpu.memory_space<vmem>>, vector<8x32xf32>
      tpu.vector_store %arg19[%c0_94, %c0_95], %120 {strides = array<i32>} : memref<8x32xf32, #tpu.memory_space<vmem>>, vector<8x32xf32>,
      %c0_96 = arith.constant 0 : index
      %c0_97 = arith.constant 0 : index
      %122 = vector.load %arg20[%c0_96, %c0_97] : memref<8x32xf32, #tpu.memory_space<vmem>>, vector<8x32xf32>
      tpu.vector_store %arg20[%c0_96, %c0_97], %118 {strides = array<i32>} : memref<8x32xf32, #tpu.memory_space<vmem>>, vector<8x32xf32>,
      %123 = arith.index_cast %54 : i32 to index
      %c32 = arith.constant 32 : index
      %124 = vector.load %arg16[%123, %c32] : memref<64x64xf32, #tpu.memory_space<vmem>>, vector<8x32xf32>
      tpu.vector_store %arg16[%123, %c32], %120 {strides = array<i32>} : memref<64x64xf32, #tpu.memory_space<vmem>>, vector<8x32xf32>,
    }
    %c8_i32_30 = arith.constant 8 : i32
    %c0_31 = arith.constant 0 : index
    %c0_32 = arith.constant 0 : index
    %24 = vector.load %arg16[%c0_31, %c0_32] : memref<64x64xf32, #tpu.memory_space<vmem>>, vector<64x64xf32>
    %c0_33 = arith.constant 0 : index
    %c0_34 = arith.constant 0 : index
    %25 = vector.load %arg7[%c0_33, %c0_34] : memref<64x128xf32, #tpu.memory_space<vmem>>, vector<64x128xf32>
    %cst_35 = arith.constant dense<0.000000e+00> : vector<64x128xf32>
    %26 = tpu.matmul %24, %25, %cst_35 {dimension_numbers = #tpu.dot_dimension_numbers<[1], [0], [0], [1], [0, 0, 1, 1], [], []>} : vector<64x64xf32>, vector<64x128xf32>, vector<64x128xf32> -> vector<64x128xf32>
    %c0_36 = arith.constant 0 : index
    %c0_37 = arith.constant 0 : index
    %27 = vector.load %arg9[%c0_36, %c0_37] : memref<1x128xf32, #tpu.memory_space<vmem>>, vector<1x128xf32>
    %28 = vector.broadcast %27 : vector<1x128xf32> to vector<64x128xf32>
    %29 = arith.addf %26, %28 : vector<64x128xf32>
    %c0_38 = arith.constant 0 : index
    %c0_39 = arith.constant 0 : index
    %30 = vector.load %arg14[%c0_38, %c0_39] : memref<64x128xf32, #tpu.memory_space<vmem>>, vector<64x128xf32>
    tpu.vector_store %arg14[%c0_38, %c0_39], %29 {strides = array<i32>} : memref<64x128xf32, #tpu.memory_space<vmem>>, vector<64x128xf32>,
    %c0_40 = arith.constant 0 : index
    %c0_41 = arith.constant 0 : index
    %31 = vector.load %arg10[%c0_40, %c0_41] : memref<64x128xf32, #tpu.memory_space<vmem>>, vector<64x128xf32>
    %cst_42 = arith.constant dense<0.000000e+00> : vector<64x128xf32>
    %32 = tpu.matmul %24, %31, %cst_42 {dimension_numbers = #tpu.dot_dimension_numbers<[1], [0], [0], [1], [0, 0, 1, 1], [], []>} : vector<64x64xf32>, vector<64x128xf32>, vector<64x128xf32> -> vector<64x128xf32>
    %c0_43 = arith.constant 0 : index
    %c0_44 = arith.constant 0 : index
    %33 = vector.load %arg12[%c0_43, %c0_44] : memref<1x128xf32, #tpu.memory_space<vmem>>, vector<1x128xf32>
    %34 = vector.broadcast %33 : vector<1x128xf32> to vector<64x128xf32>
    %35 = arith.addf %32, %34 : vector<64x128xf32>
    %c0_45 = arith.constant 0 : index
    %c0_46 = arith.constant 0 : index
    %36 = vector.load %arg15[%c0_45, %c0_46] : memref<64x128xf32, #tpu.memory_space<vmem>>, vector<64x128xf32>
    tpu.vector_store %arg15[%c0_45, %c0_46], %35 {strides = array<i32>} : memref<64x128xf32, #tpu.memory_space<vmem>>, vector<64x128xf32>,
    %c0_47 = arith.constant 0 : index
    %c0_48 = arith.constant 0 : index
    %37 = vector.load %arg8[%c0_47, %c0_48] : memref<32x128xf32, #tpu.memory_space<vmem>>, vector<32x128xf32>
    %c0_49 = arith.constant 0 : index
    %c0_50 = arith.constant 0 : index
    %38 = vector.load %arg11[%c0_49, %c0_50] : memref<32x128xf32, #tpu.memory_space<vmem>>, vector<32x128xf32>
    %cst_51 = arith.constant 0.000000e+00 : f32
    %39 = vector.broadcast %cst_51 : f32 to vector<8x32xf32>
    %c0_52 = arith.constant 0 : index
    %c0_53 = arith.constant 0 : index
    %40 = vector.load %arg17[%c0_52, %c0_53] : memref<8x32xf32, #tpu.memory_space<vmem>>, vector<8x32xf32>
    tpu.vector_store %arg17[%c0_52, %c0_53], %39 {strides = array<i32>} : memref<8x32xf32, #tpu.memory_space<vmem>>, vector<8x32xf32>,
    %cst_54 = arith.constant 0.000000e+00 : f32
    %41 = vector.broadcast %cst_54 : f32 to vector<8x32xf32>
    %c0_55 = arith.constant 0 : index
    %c0_56 = arith.constant 0 : index
    %42 = vector.load %arg18[%c0_55, %c0_56] : memref<8x32xf32, #tpu.memory_space<vmem>>, vector<8x32xf32>
    tpu.vector_store %arg18[%c0_55, %c0_56], %41 {strides = array<i32>} : memref<8x32xf32, #tpu.memory_space<vmem>>, vector<8x32xf32>,
    %cst_57 = arith.constant 0.000000e+00 : f32
    %43 = vector.broadcast %cst_57 : f32 to vector<8x32xf32>
    %c0_58 = arith.constant 0 : index
    %c0_59 = arith.constant 0 : index
    %44 = vector.load %arg19[%c0_58, %c0_59] : memref<8x32xf32, #tpu.memory_space<vmem>>, vector<8x32xf32>
    tpu.vector_store %arg19[%c0_58, %c0_59], %43 {strides = array<i32>} : memref<8x32xf32, #tpu.memory_space<vmem>>, vector<8x32xf32>,
    %cst_60 = arith.constant 0.000000e+00 : f32
    %45 = vector.broadcast %cst_60 : f32 to vector<8x32xf32>
    %c0_61 = arith.constant 0 : index
    %c0_62 = arith.constant 0 : index
    %46 = vector.load %arg20[%c0_61, %c0_62] : memref<8x32xf32, #tpu.memory_space<vmem>>, vector<8x32xf32>
    tpu.vector_store %arg20[%c0_61, %c0_62], %45 {strides = array<i32>} : memref<8x32xf32, #tpu.memory_space<vmem>>, vector<8x32xf32>,
    %c0_i32_63 = arith.constant 0 : i32
    %c8_i32_64 = arith.constant 8 : i32
    %47 = arith.addi %c0_i32_63, %c8_i32_64 : i32
    %c1_i32_65 = arith.constant 1 : i32
    scf.for %arg21 = %c0_i32_63 to %47 step %c1_i32_65  : i32 {
      %c1_i32_67 = arith.constant 1 : i32
      %48 = arith.muli %arg21, %c1_i32_67 : i32
      %c0_i32_68 = arith.constant 0 : i32
      %49 = arith.addi %c0_i32_68, %48 : i32
      %c8_i32_69 = arith.constant 8 : i32
      %50 = arith.muli %49, %c8_i32_69 : i32
      %51 = tpu.assume_multiple %50, 8 : i32
      %c7_i32 = arith.constant 7 : i32
      %52 = arith.subi %c7_i32, %49 : i32
      %c8_i32_70 = arith.constant 8 : i32
      %53 = arith.muli %52, %c8_i32_70 : i32
      %54 = tpu.assume_multiple %53, 8 : i32
      %55 = arith.index_cast %51 : i32 to index
      %c0_71 = arith.constant 0 : index
      %56 = vector.load %arg14[%55, %c0_71] : memref<64x128xf32, #tpu.memory_space<vmem>>, vector<8x128xf32>
      %c0_72 = arith.constant 0 : index
      %c0_73 = arith.constant 0 : index
      %57 = vector.load %arg17[%c0_72, %c0_73] : memref<8x32xf32, #tpu.memory_space<vmem>>, vector<8x32xf32>
      %c0_74 = arith.constant 0 : index
      %c0_75 = arith.constant 0 : index
      %58 = vector.load %arg18[%c0_74, %c0_75] : memref<8x32xf32, #tpu.memory_space<vmem>>, vector<8x32xf32>
      %cst_76 = arith.constant dense<0.000000e+00> : vector<8x128xf32>
      %59 = tpu.matmul %57, %37, %cst_76 {dimension_numbers = #tpu.dot_dimension_numbers<[1], [0], [0], [1], [0, 0, 1, 1], [], []>} : vector<8x32xf32>, vector<32x128xf32>, vector<8x128xf32> -> vector<8x128xf32>
      %60 = arith.addf %56, %59 : vector<8x128xf32>
      %61 = vector.extract_strided_slice %60 {offsets = [0, 0], sizes = [8, 32], strides = [1, 1]} : vector<8x128xf32> to vector<8x32xf32>
      %62 = arith.negf %61 : vector<8x32xf32>
      %63 = math.exp %62 : vector<8x32xf32>
      %cst_77 = arith.constant 1.000000e+00 : f32
      %64 = vector.broadcast %cst_77 : f32 to vector<8x32xf32>
      %65 = arith.addf %64, %63 : vector<8x32xf32>
      %66 = arith.divf %64, %65 : vector<8x32xf32>
      %67 = vector.extract_strided_slice %60 {offsets = [0, 32], sizes = [8, 32], strides = [1, 1]} : vector<8x128xf32> to vector<8x32xf32>
      %68 = arith.negf %67 : vector<8x32xf32>
      %69 = math.exp %68 : vector<8x32xf32>
      %cst_78 = arith.constant 1.000000e+00 : f32
      %70 = vector.broadcast %cst_78 : f32 to vector<8x32xf32>
      %71 = arith.addf %70, %69 : vector<8x32xf32>
      %72 = arith.divf %70, %71 : vector<8x32xf32>
      %73 = vector.extract_strided_slice %60 {offsets = [0, 64], sizes = [8, 32], strides = [1, 1]} : vector<8x128xf32> to vector<8x32xf32>
      %74 = math.tanh %73 : vector<8x32xf32>
      %75 = vector.extract_strided_slice %60 {offsets = [0, 96], sizes = [8, 32], strides = [1, 1]} : vector<8x128xf32> to vector<8x32xf32>
      %76 = arith.negf %75 : vector<8x32xf32>
      %77 = math.exp %76 : vector<8x32xf32>
      %cst_79 = arith.constant 1.000000e+00 : f32
      %78 = vector.broadcast %cst_79 : f32 to vector<8x32xf32>
      %79 = arith.addf %78, %77 : vector<8x32xf32>
      %80 = arith.divf %78, %79 : vector<8x32xf32>
      %81 = arith.mulf %72, %58 : vector<8x32xf32>
      %82 = arith.mulf %66, %74 : vector<8x32xf32>
      %83 = arith.addf %81, %82 : vector<8x32xf32>
      %84 = math.tanh %83 : vector<8x32xf32>
      %85 = arith.mulf %80, %84 : vector<8x32xf32>
      %c0_80 = arith.constant 0 : index
      %c0_81 = arith.constant 0 : index
      %86 = vector.load %arg17[%c0_80, %c0_81] : memref<8x32xf32, #tpu.memory_space<vmem>>, vector<8x32xf32>
      tpu.vector_store %arg17[%c0_80, %c0_81], %85 {strides = array<i32>} : memref<8x32xf32, #tpu.memory_space<vmem>>, vector<8x32xf32>,
      %c0_82 = arith.constant 0 : index
      %c0_83 = arith.constant 0 : index
      %87 = vector.load %arg18[%c0_82, %c0_83] : memref<8x32xf32, #tpu.memory_space<vmem>>, vector<8x32xf32>
      tpu.vector_store %arg18[%c0_82, %c0_83], %83 {strides = array<i32>} : memref<8x32xf32, #tpu.memory_space<vmem>>, vector<8x32xf32>,
      %88 = arith.index_cast %51 : i32 to index
      %c0_84 = arith.constant 0 : index
      %89 = vector.load %arg13[%88, %c0_84] : memref<64x64xf32, #tpu.memory_space<vmem>>, vector<8x32xf32>
      tpu.vector_store %arg13[%88, %c0_84], %85 {strides = array<i32>} : memref<64x64xf32, #tpu.memory_space<vmem>>, vector<8x32xf32>,
      %90 = arith.index_cast %54 : i32 to index
      %c0_85 = arith.constant 0 : index
      %91 = vector.load %arg15[%90, %c0_85] : memref<64x128xf32, #tpu.memory_space<vmem>>, vector<8x128xf32>
      %c0_86 = arith.constant 0 : index
      %c0_87 = arith.constant 0 : index
      %92 = vector.load %arg19[%c0_86, %c0_87] : memref<8x32xf32, #tpu.memory_space<vmem>>, vector<8x32xf32>
      %c0_88 = arith.constant 0 : index
      %c0_89 = arith.constant 0 : index
      %93 = vector.load %arg20[%c0_88, %c0_89] : memref<8x32xf32, #tpu.memory_space<vmem>>, vector<8x32xf32>
      %cst_90 = arith.constant dense<0.000000e+00> : vector<8x128xf32>
      %94 = tpu.matmul %92, %38, %cst_90 {dimension_numbers = #tpu.dot_dimension_numbers<[1], [0], [0], [1], [0, 0, 1, 1], [], []>} : vector<8x32xf32>, vector<32x128xf32>, vector<8x128xf32> -> vector<8x128xf32>
      %95 = arith.addf %91, %94 : vector<8x128xf32>
      %96 = vector.extract_strided_slice %95 {offsets = [0, 0], sizes = [8, 32], strides = [1, 1]} : vector<8x128xf32> to vector<8x32xf32>
      %97 = arith.negf %96 : vector<8x32xf32>
      %98 = math.exp %97 : vector<8x32xf32>
      %cst_91 = arith.constant 1.000000e+00 : f32
      %99 = vector.broadcast %cst_91 : f32 to vector<8x32xf32>
      %100 = arith.addf %99, %98 : vector<8x32xf32>
      %101 = arith.divf %99, %100 : vector<8x32xf32>
      %102 = vector.extract_strided_slice %95 {offsets = [0, 32], sizes = [8, 32], strides = [1, 1]} : vector<8x128xf32> to vector<8x32xf32>
      %103 = arith.negf %102 : vector<8x32xf32>
      %104 = math.exp %103 : vector<8x32xf32>
      %cst_92 = arith.constant 1.000000e+00 : f32
      %105 = vector.broadcast %cst_92 : f32 to vector<8x32xf32>
      %106 = arith.addf %105, %104 : vector<8x32xf32>
      %107 = arith.divf %105, %106 : vector<8x32xf32>
      %108 = vector.extract_strided_slice %95 {offsets = [0, 64], sizes = [8, 32], strides = [1, 1]} : vector<8x128xf32> to vector<8x32xf32>
      %109 = math.tanh %108 : vector<8x32xf32>
      %110 = vector.extract_strided_slice %95 {offsets = [0, 96], sizes = [8, 32], strides = [1, 1]} : vector<8x128xf32> to vector<8x32xf32>
      %111 = arith.negf %110 : vector<8x32xf32>
      %112 = math.exp %111 : vector<8x32xf32>
      %cst_93 = arith.constant 1.000000e+00 : f32
      %113 = vector.broadcast %cst_93 : f32 to vector<8x32xf32>
      %114 = arith.addf %113, %112 : vector<8x32xf32>
      %115 = arith.divf %113, %114 : vector<8x32xf32>
      %116 = arith.mulf %107, %93 : vector<8x32xf32>
      %117 = arith.mulf %101, %109 : vector<8x32xf32>
      %118 = arith.addf %116, %117 : vector<8x32xf32>
      %119 = math.tanh %118 : vector<8x32xf32>
      %120 = arith.mulf %115, %119 : vector<8x32xf32>
      %c0_94 = arith.constant 0 : index
      %c0_95 = arith.constant 0 : index
      %121 = vector.load %arg19[%c0_94, %c0_95] : memref<8x32xf32, #tpu.memory_space<vmem>>, vector<8x32xf32>
      tpu.vector_store %arg19[%c0_94, %c0_95], %120 {strides = array<i32>} : memref<8x32xf32, #tpu.memory_space<vmem>>, vector<8x32xf32>,
      %c0_96 = arith.constant 0 : index
      %c0_97 = arith.constant 0 : index
      %122 = vector.load %arg20[%c0_96, %c0_97] : memref<8x32xf32, #tpu.memory_space<vmem>>, vector<8x32xf32>
      tpu.vector_store %arg20[%c0_96, %c0_97], %118 {strides = array<i32>} : memref<8x32xf32, #tpu.memory_space<vmem>>, vector<8x32xf32>,
      %123 = arith.index_cast %54 : i32 to index
      %c32 = arith.constant 32 : index
      %124 = vector.load %arg13[%123, %c32] : memref<64x64xf32, #tpu.memory_space<vmem>>, vector<8x32xf32>
      tpu.vector_store %arg13[%123, %c32], %120 {strides = array<i32>} : memref<64x64xf32, #tpu.memory_space<vmem>>, vector<8x32xf32>,
    }
    %c8_i32_66 = arith.constant 8 : i32
    return
  }
}

</mosaic_0001>

<llo_original>
// kernel: tpu_custom_call.1
$region0: #{tpu_custom_call.1}
  #allocation0 [shape = 'u32[]', space=smem, size = 0x4, offset = 0x4, fixed_abs, tag = 'smem constant byte address 0x4 - core index']
  #allocation1 [shape = 'u32[72,128]{1,0:T(1,128)}', space=vmem, size = 0x9000, scoped, tag = 'internal scratch']
  #allocation2 [shape = 'f32[64,128]{1,0:T(8,128)}', space=vmem, size = 0x8000, scoped, tag = 'scratch operand']
  #allocation3 [shape = 'f32[64,128]{1,0:T(8,128)}', space=vmem, size = 0x8000, scoped, tag = 'scratch operand']
  #allocation4 [shape = 'f32[64,64]{1,0:T(8,128)}', space=vmem, size = 0x8000, scoped, tag = 'scratch operand']
  #allocation5 [shape = 'f32[8,32]{1,0:T(8,128)}', space=vmem, size = 0x1000, scoped, tag = 'scratch operand']
  #allocation6 [shape = 'f32[8,32]{1,0:T(8,128)}', space=vmem, size = 0x1000, scoped, tag = 'scratch operand']
  #allocation7 [shape = 'f32[8,32]{1,0:T(8,128)}', space=vmem, size = 0x1000, scoped, tag = 'scratch operand']
  #allocation8 [shape = 'f32[8,32]{1,0:T(8,128)}', space=vmem, size = 0x1000, scoped, tag = 'scratch operand']
  %s0 = inlined_call_operand.vmem [shape: f32[64,32], index: 0, kind: input, shape index: {}]
  %s1 = inlined_call_operand.vmem [shape: f32[32,128], index: 1, kind: input, shape index: {}]
  %s2 = inlined_call_operand.hbm [shape: f32[32,128], index: 2, kind: input, shape index: {}]
  %s3 = inlined_call_operand.vmem [shape: f32[1,128], index: 3, kind: input, shape index: {}]
  %s4 = inlined_call_operand.hbm [shape: f32[32,128], index: 4, kind: input, shape index: {}]
  %s5 = inlined_call_operand.hbm [shape: f32[32,128], index: 5, kind: input, shape index: {}]
  %s6 = inlined_call_operand.vmem [shape: f32[1,128], index: 6, kind: input, shape index: {}]
  %s7 = inlined_call_operand.vmem [shape: f32[64,128], index: 7, kind: input, shape index: {}]
  %s8 = inlined_call_operand.hbm [shape: f32[32,128], index: 8, kind: input, shape index: {}]
  %s9 = inlined_call_operand.vmem [shape: f32[1,128], index: 9, kind: input, shape index: {}]
  %s10 = inlined_call_operand.hbm [shape: f32[64,128], index: 10, kind: input, shape index: {}]
  %s11 = inlined_call_operand.hbm [shape: f32[32,128], index: 11, kind: input, shape index: {}]
  %s12 = inlined_call_operand.vmem [shape: f32[1,128], index: 12, kind: input, shape index: {}]
  %s13 = inlined_call_operand.hbm [shape: f32[64,64], index: 13, kind: output, shape index: {}]
  %s14 = sld [smem:[#allocation0]]
  $region100: #{tpu_custom_call.1} parent=0
    _
  %s16 = ssub.s32 1, %s14
  %s17 = scalar_select 0, %s16, %s14
  $region1: #{tpu_custom_call.1} parent=0
    #allocation9 [shape = 'u8[16384]{0}', space=vmem, size = 0x4000, scoped, tag = 'input window, operand 2, single buffered']
    #allocation10 [shape = 's32[1]{0}', space=sflag, size = 0x4, scoped, tag = 'scoped memory for tpu_custom_call.1']
    #allocation11 [shape = 's32[1]{0}', space=sflag, size = 0x4, scoped, tag = 'scoped memory for tpu_custom_call.1']
    #allocation12 [shape = 'u8[16384]{0}', space=vmem, size = 0x4000, scoped, tag = 'input window, operand 4, single buffered']
    #allocation13 [shape = 's32[1]{0}', space=sflag, size = 0x4, scoped, tag = 'scoped memory for tpu_custom_call.1']
    #allocation14 [shape = 'u8[16384]{0}', space=vmem, size = 0x4000, scoped, tag = 'input window, operand 5, single buffered']
    #allocation15 [shape = 'u8[16384]{0}', space=vmem, size = 0x4000, scoped, tag = 'input window, operand 8, single buffered']
    #allocation16 [shape = 's32[1]{0}', space=sflag, size = 0x4, scoped, tag = 'scoped memory for tpu_custom_call.1']
    #allocation17 [shape = 'u8[32768]{0}', space=vmem, size = 0x8000, scoped, tag = 'input window, operand 10, single buffered']
    #allocation18 [shape = 'u8[16384]{0}', space=vmem, size = 0x4000, scoped, tag = 'input window, operand 11, single buffered']
    #allocation19 [shape = 's32[1]{0}', space=sflag, size = 0x4, scoped, tag = 'scoped memory for tpu_custom_call.1']
    #allocation20 [shape = 'u8[32768]{0}', space=vmem, size = 0x8000, scoped, tag = 'output window, operand 0, single buffered']
    %18 = vsyncpa [#allocation10], 0
    %19 = vsyncpa [#allocation13], 0
    %20 = vsyncpa [#allocation16], 0
    %21 = vsyncpa [#allocation19], 0
    %22 = vsyncpa [#allocation11], 0
    // Predicated region
    $region2: #{tpu_custom_call.1} parent=1 // pred_check
      _
    $region3: #{tpu_custom_call.1} parent=1 // pred_check_branch
      %24 = sbr.rel (0) target = $region5
    $region4: #{tpu_custom_call.1} parent=1 // pred_region
      _
    $region5: #{tpu_custom_call.1} parent=1 // pred_fallthru
      _
    // Predicated region
    $region6: #{tpu_custom_call.1} parent=1 // pred_check
      _
    $region7: #{tpu_custom_call.1} parent=1 // pred_check_branch
      %26 = sbr.rel (0) target = $region9
    $region8: #{tpu_custom_call.1} parent=1 // pred_region
      _
    $region9: #{tpu_custom_call.1} parent=1 // pred_fallthru
      _
    // Predicated region
    $region10: #{tpu_custom_call.1} parent=1 // pred_check
      _
    $region11: #{tpu_custom_call.1} parent=1 // pred_check_branch
      %28 = sbr.rel (0) target = $region13
    $region12: #{tpu_custom_call.1} parent=1 // pred_region
      %30 = vsyncadd [#allocation10], 0
      %s31 = sshll.u32 %s2, 4
      %s32 = int_to_ptr.hbm [resolvable:$true] %s31
      %s33 = sshll.u32 [#allocation9], 4
      %s34 = int_to_ptr.vmem [resolvable:$true] %s33
      %39 = dma.hbm_to_vmem [thread:$0]  %s32, 512, %s34, [#allocation10], 128, 128, 8
    $region13: #{tpu_custom_call.1} parent=1 // pred_fallthru
      _
    // Predicated region
    $region14: #{tpu_custom_call.1} parent=1 // pred_check
      _
    $region15: #{tpu_custom_call.1} parent=1 // pred_check_branch
      %41 = sbr.rel (0) target = $region17
    $region16: #{tpu_custom_call.1} parent=1 // pred_region
      _
    $region17: #{tpu_custom_call.1} parent=1 // pred_fallthru
      _
    // Predicated region
    $region18: #{tpu_custom_call.1} parent=1 // pred_check
      _
    $region19: #{tpu_custom_call.1} parent=1 // pred_check_branch
      %43 = sbr.rel (0) target = $region21
    $region20: #{tpu_custom_call.1} parent=1 // pred_region
      %45 = vsyncadd [#allocation13], 0
      %s46 = sshll.u32 %s4, 4
      %s47 = int_to_ptr.hbm [resolvable:$true] %s46
      %s48 = sshll.u32 [#allocation12], 4
      %s49 = int_to_ptr.vmem [resolvable:$true] %s48
      %54 = dma.hbm_to_vmem [thread:$0]  %s47, 512, %s49, [#allocation13], 128, 128, 8
    $region21: #{tpu_custom_call.1} parent=1 // pred_fallthru
      _
    // Predicated region
    $region22: #{tpu_custom_call.1} parent=1 // pred_check
      _
    $region23: #{tpu_custom_call.1} parent=1 // pred_check_branch
      %56 = sbr.rel (0) target = $region25
    $region24: #{tpu_custom_call.1} parent=1 // pred_region
      %58 = vsyncadd [#allocation13], 0
      %s59 = sshll.u32 %s5, 4
      %s60 = int_to_ptr.hbm [resolvable:$true] %s59
      %s61 = sshll.u32 [#allocation14], 4
      %s62 = int_to_ptr.vmem [resolvable:$true] %s61
      %67 = dma.hbm_to_vmem [thread:$0]  %s60, 512, %s62, [#allocation13], 128, 128, 8
    $region25: #{tpu_custom_call.1} parent=1 // pred_fallthru
      _
    // Predicated region
    $region26: #{tpu_custom_call.1} parent=1 // pred_check
      _
    $region27: #{tpu_custom_call.1} parent=1 // pred_check_branch
      %69 = sbr.rel (0) target = $region29
    $region28: #{tpu_custom_call.1} parent=1 // pred_region
      _
    $region29: #{tpu_custom_call.1} parent=1 // pred_fallthru
      _
    // Predicated region
    $region30: #{tpu_custom_call.1} parent=1 // pred_check
      _
    $region31: #{tpu_custom_call.1} parent=1 // pred_check_branch
      %71 = sbr.rel (0) target = $region33
    $region32: #{tpu_custom_call.1} parent=1 // pred_region
      _
    $region33: #{tpu_custom_call.1} parent=1 // pred_fallthru
      _
    // Predicated region
    $region34: #{tpu_custom_call.1} parent=1 // pred_check
      _
    $region35: #{tpu_custom_call.1} parent=1 // pred_check_branch
      %73 = sbr.rel (0) target = $region37
    $region36: #{tpu_custom_call.1} parent=1 // pred_region
      %75 = vsyncadd [#allocation16], 0
      %s76 = sshll.u32 %s8, 4
      %s77 = int_to_ptr.hbm [resolvable:$true] %s76
      %s78 = sshll.u32 [#allocation15], 4
      %s79 = int_to_ptr.vmem [resolvable:$true] %s78
      %84 = dma.hbm_to_vmem [thread:$0]  %s77, 512, %s79, [#allocation16], 128, 128, 8
    $region37: #{tpu_custom_call.1} parent=1 // pred_fallthru
      _
    // Predicated region
    $region38: #{tpu_custom_call.1} parent=1 // pred_check
      _
    $region39: #{tpu_custom_call.1} parent=1 // pred_check_branch
      %86 = sbr.rel (0) target = $region41
    $region40: #{tpu_custom_call.1} parent=1 // pred_region
      _
    $region41: #{tpu_custom_call.1} parent=1 // pred_fallthru
      _
    // Predicated region
    $region42: #{tpu_custom_call.1} parent=1 // pred_check
      _
    $region43: #{tpu_custom_call.1} parent=1 // pred_check_branch
      %88 = sbr.rel (0) target = $region45
    $region44: #{tpu_custom_call.1} parent=1 // pred_region
      %90 = vsyncadd [#allocation16], 0
      %s91 = sshll.u32 %s10, 4
      %s92 = int_to_ptr.hbm [resolvable:$true] %s91
      %s93 = sshll.u32 [#allocation17], 4
      %s94 = int_to_ptr.vmem [resolvable:$true] %s93
      %99 = dma.hbm_to_vmem [thread:$0]  %s92, 1024, %s94, [#allocation16], 128, 128, 8
    $region45: #{tpu_custom_call.1} parent=1 // pred_fallthru
      _
    // Predicated region
    $region46: #{tpu_custom_call.1} parent=1 // pred_check
      _
    $region47: #{tpu_custom_call.1} parent=1 // pred_check_branch
      %101 = sbr.rel (0) target = $region49
    $region48: #{tpu_custom_call.1} parent=1 // pred_region
      %103 = vsyncadd [#allocation19], 0
      %s104 = sshll.u32 %s11, 4
      %s105 = int_to_ptr.hbm [resolvable:$true] %s104
      %s106 = sshll.u32 [#allocation18], 4
      %s107 = int_to_ptr.vmem [resolvable:$true] %s106
      %112 = dma.hbm_to_vmem [thread:$0]  %s105, 512, %s107, [#allocation19], 128, 128, 8
    $region49: #{tpu_custom_call.1} parent=1 // pred_fallthru
      _
    // Predicated region
    $region50: #{tpu_custom_call.1} parent=1 // pred_check
      _
    $region51: #{tpu_custom_call.1} parent=1 // pred_check_branch
      %114 = sbr.rel (0) target = $region53
    $region52: #{tpu_custom_call.1} parent=1 // pred_region
      _
    $region53: #{tpu_custom_call.1} parent=1 // pred_fallthru
      _
    // Predicated region
    $region54: #{tpu_custom_call.1} parent=1 // pred_check
      _
    $region55: #{tpu_custom_call.1} parent=1 // pred_check_branch
      %116 = sbr.rel (0) target = $region57
    $region56: #{tpu_custom_call.1} parent=1 // pred_region
      %118 = dma.done [#allocation10], 512
    $region57: #{tpu_custom_call.1} parent=1 // pred_fallthru
      _
    // Predicated region
    $region58: #{tpu_custom_call.1} parent=1 // pred_check
      _
    $region59: #{tpu_custom_call.1} parent=1 // pred_check_branch
      %120 = sbr.rel (0) target = $region61
    $region60: #{tpu_custom_call.1} parent=1 // pred_region
      %122 = dma.done [#allocation13], 512
    $region61: #{tpu_custom_call.1} parent=1 // pred_fallthru
      _
    // Predicated region
    $region62: #{tpu_custom_call.1} parent=1 // pred_check
      _
    $region63: #{tpu_custom_call.1} parent=1 // pred_check_branch
      %124 = sbr.rel (0) target = $region65
    $region64: #{tpu_custom_call.1} parent=1 // pred_region
      %126 = dma.done [#allocation13], 512
    $region65: #{tpu_custom_call.1} parent=1 // pred_fallthru
      _
    // Predicated region
    $region66: #{tpu_custom_call.1} parent=1 // pred_check
      _
    $region67: #{tpu_custom_call.1} parent=1 // pred_check_branch
      %128 = sbr.rel (0) target = $region69
    $region68: #{tpu_custom_call.1} parent=1 // pred_region
      %130 = dma.done [#allocation16], 512
    $region69: #{tpu_custom_call.1} parent=1 // pred_fallthru
      _
    // Predicated region
    $region70: #{tpu_custom_call.1} parent=1 // pred_check
      _
    $region71: #{tpu_custom_call.1} parent=1 // pred_check_branch
      %132 = sbr.rel (0) target = $region73
    $region72: #{tpu_custom_call.1} parent=1 // pred_region
      %134 = dma.done [#allocation16], 1024
    $region73: #{tpu_custom_call.1} parent=1 // pred_fallthru
      _
    // Predicated region
    $region74: #{tpu_custom_call.1} parent=1 // pred_check
      _
    $region75: #{tpu_custom_call.1} parent=1 // pred_check_branch
      %136 = sbr.rel (0) target = $region77
    $region76: #{tpu_custom_call.1} parent=1 // pred_region
      %138 = dma.done [#allocation19], 512
    $region77: #{tpu_custom_call.1} parent=1 // pred_fallthru
      _
    %v139 = vld [vmem:[%s0] sm:$0xff]
    %v140 = vld [vmem:[%s0 + $0x8] sm:$0xff]
    %v141 = vld [vmem:[%s0 + $0x10] sm:$0xff]
    %v142 = vld [vmem:[%s0 + $0x18] sm:$0xff]
    %v143 = vld [vmem:[%s0 + $0x20] sm:$0xff]
    %v144 = vld [vmem:[%s0 + $0x28] sm:$0xff]
    %v145 = vld [vmem:[%s0 + $0x30] sm:$0xff]
    %v146 = vld [vmem:[%s0 + $0x38] sm:$0xff]
    %v147 = vld [vmem:[%s1] sm:$0xff]
    %v148 = vld [vmem:[%s1 + $0x8] sm:$0xff]
    %v149 = vld [vmem:[%s1 + $0x10] sm:$0xff]
    %v150 = vld [vmem:[%s1 + $0x18] sm:$0xff]
    %v151 = vld [vmem:[%s3] sm:$0x1]
    %v153 = vperm.slane %v151, 0
    %vm155 = vcmask 261120
    %v157 = vsel %vm155, %v139, 0
    %v160 = vsel %vm155, %v140, 0
    %v163 = vsel %vm155, %v141, 0
    %v166 = vsel %vm155, %v142, 0
    %v169 = vsel %vm155, %v143, 0
    %v172 = vsel %vm155, %v144, 0
    %v175 = vsel %vm155, %v145, 0
    %v178 = vsel %vm155, %v146, 0
    %180 = vmatpush.msra.mxu0 0.0
    %181 = vmatpush.msra.mxu0 0.0
    %182 = vmatpush.msra.mxu0 0.0
    %183 = vmatpush.msra.mxu0 0.0
    %184 = vmatpush.msra.mxu0 0.0
    %185 = vmatpush.msra.mxu0 0.0
    %186 = vmatpush.msra.mxu0 0.0
    %187 = vmatpush.msra.mxu0 0.0
    %188 = vmatpush.msra.mxu0 0.0
    %189 = vmatpush.msra.mxu0 0.0
    %190 = vmatpush.msra.mxu0 0.0
    %191 = vmatpush.msra.mxu0 0.0
    %192 = vmatpush.msra.mxu0 %v150
    %193 = vmatpush.msra.mxu0 %v149
    %194 = vmatpush.msra.mxu0 %v148
    %195 = vmatpush.msra.mxu0 %v147
    %196 = vmatmul.f32.gmra.mxu0 %v157
    %v197 = vpop.f32.mrf.mxu0
    %v198 = vadd.f32 %v153, %v197
    %199 = vmatmul.f32.gmra.mxu0 %v160
    %v200 = vpop.f32.mrf.mxu0
    %v201 = vadd.f32 %v153, %v200
    %202 = vmatmul.f32.gmra.mxu0 %v163
    %v203 = vpop.f32.mrf.mxu0
    %v204 = vadd.f32 %v153, %v203
    %205 = vmatmul.f32.gmra.mxu0 %v166
    %v206 = vpop.f32.mrf.mxu0
    %v207 = vadd.f32 %v153, %v206
    %208 = vmatmul.f32.gmra.mxu0 %v169
    %v209 = vpop.f32.mrf.mxu0
    %v210 = vadd.f32 %v153, %v209
    %211 = vmatmul.f32.gmra.mxu0 %v172
    %v212 = vpop.f32.mrf.mxu0
    %v213 = vadd.f32 %v153, %v212
    %214 = vmatmul.f32.gmra.mxu0 %v175
    %v215 = vpop.f32.mrf.mxu0
    %v216 = vadd.f32 %v153, %v215
    %217 = vmatmul.f32.gmra.mxu0 %v178
    %v218 = vpop.f32.mrf.mxu0
    %v219 = vadd.f32 %v153, %v218
    %220 = vdwg.mxu0
    %221 = vst [vmem:[#allocation2] sm:$0xff] %v198
    %222 = vst [vmem:[#allocation2 + $0x8] sm:$0xff] %v201
    %223 = vst [vmem:[#allocation2 + $0x10] sm:$0xff] %v204
    %224 = vst [vmem:[#allocation2 + $0x18] sm:$0xff] %v207
    %225 = vst [vmem:[#allocation2 + $0x20] sm:$0xff] %v210
    %226 = vst [vmem:[#allocation2 + $0x28] sm:$0xff] %v213
    %227 = vst [vmem:[#allocation2 + $0x30] sm:$0xff] %v216
    %228 = vst [vmem:[#allocation2 + $0x38] sm:$0xff] %v219
    %v229 = vld [vmem:[#allocation12] sm:$0xff]
    %v230 = vld [vmem:[#allocation12 + $0x8] sm:$0xff]
    %v231 = vld [vmem:[#allocation12 + $0x10] sm:$0xff]
    %v232 = vld [vmem:[#allocation12 + $0x18] sm:$0xff]
    %v233 = vld [vmem:[%s6] sm:$0x1]
    %v235 = vperm.slane %v233, 0
    %237 = vmatpush.msra.mxu0 0.0
    %238 = vmatpush.msra.mxu0 0.0
    %239 = vmatpush.msra.mxu0 0.0
    %240 = vmatpush.msra.mxu0 0.0
    %241 = vmatpush.msra.mxu0 0.0
    %242 = vmatpush.msra.mxu0 0.0
    %243 = vmatpush.msra.mxu0 0.0
    %244 = vmatpush.msra.mxu0 0.0
    %245 = vmatpush.msra.mxu0 0.0
    %246 = vmatpush.msra.mxu0 0.0
    %247 = vmatpush.msra.mxu0 0.0
    %248 = vmatpush.msra.mxu0 0.0
    %249 = vmatpush.msra.mxu0 %v232
    %250 = vmatpush.msra.mxu0 %v231
    %251 = vmatpush.msra.mxu0 %v230
    %252 = vmatpush.msra.mxu0 %v229
    %253 = vmatmul.f32.gmra.mxu0 %v157
    %v254 = vpop.f32.mrf.mxu0
    %v255 = vadd.f32 %v235, %v254
    %256 = vmatmul.f32.gmra.mxu0 %v160
    %v257 = vpop.f32.mrf.mxu0
    %v258 = vadd.f32 %v235, %v257
    %259 = vmatmul.f32.gmra.mxu0 %v163
    %v260 = vpop.f32.mrf.mxu0
    %v261 = vadd.f32 %v235, %v260
    %262 = vmatmul.f32.gmra.mxu0 %v166
    %v263 = vpop.f32.mrf.mxu0
    %v264 = vadd.f32 %v235, %v263
    %265 = vmatmul.f32.gmra.mxu0 %v169
    %v266 = vpop.f32.mrf.mxu0
    %v267 = vadd.f32 %v235, %v266
    %268 = vmatmul.f32.gmra.mxu0 %v172
    %v269 = vpop.f32.mrf.mxu0
    %v270 = vadd.f32 %v235, %v269
    %271 = vmatmul.f32.gmra.mxu0 %v175
    %v272 = vpop.f32.mrf.mxu0
    %v273 = vadd.f32 %v235, %v272
    %274 = vmatmul.f32.gmra.mxu0 %v178
    %v275 = vpop.f32.mrf.mxu0
    %v276 = vadd.f32 %v235, %v275
    %277 = vdwg.mxu0
    %278 = vst [vmem:[#allocation3] sm:$0xff] %v255
    %279 = vst [vmem:[#allocation3 + $0x8] sm:$0xff] %v258
    %280 = vst [vmem:[#allocation3 + $0x10] sm:$0xff] %v261
    %281 = vst [vmem:[#allocation3 + $0x18] sm:$0xff] %v264
    %282 = vst [vmem:[#allocation3 + $0x20] sm:$0xff] %v267
    %283 = vst [vmem:[#allocation3 + $0x28] sm:$0xff] %v270
    %284 = vst [vmem:[#allocation3 + $0x30] sm:$0xff] %v273
    %285 = vst [vmem:[#allocation3 + $0x38] sm:$0xff] %v276
    %v286 = vld [vmem:[#allocation9] sm:$0xff]
    %v287 = vld [vmem:[#allocation9 + $0x8] sm:$0xff]
    %v288 = vld [vmem:[#allocation9 + $0x10] sm:$0xff]
    %v289 = vld [vmem:[#allocation9 + $0x18] sm:$0xff]
    %v290 = vld [vmem:[#allocation14] sm:$0xff]
    %v291 = vld [vmem:[#allocation14 + $0x8] sm:$0xff]
    %v292 = vld [vmem:[#allocation14 + $0x10] sm:$0xff]
    %v293 = vld [vmem:[#allocation14 + $0x18] sm:$0xff]
    %294 = vst.msk [vmem:[#allocation5] sm:$0xff] %vm155, 0.0
    %295 = vst.msk [vmem:[#allocation6] sm:$0xff] %vm155, 0.0
    %296 = vst.msk [vmem:[#allocation7] sm:$0xff] %vm155, 0.0
    %297 = vst.msk [vmem:[#allocation8] sm:$0xff] %vm155, 0.0
    loop: start=0, step=1, limit=8
    $region78: #{tpu_custom_call.1} parent=1 // loop_pre_header
      _
    $region79: #{tpu_custom_call.1} parent=1 // loop_header
      %s299 = sphi 0, %s303
      %p300 = scmp.ge.s32.totalorder %s299, 8
    $region80: #{tpu_custom_call.1} parent=1 // loop_header_branch
      %302 = sbr.rel (%p300) target = $region84
    $region81: #{tpu_custom_call.1} parent=1 // loop_body
      %s304 = smul.u32 %s299, 8
      %s305 = ssub.s32 7, %s299
      %s306 = smul.u32 %s305, 8
      %s307 = scalar_lea.vmem [#allocation2], %s304
      %v308 = vld [vmem:[%s307] sm:$0xff]
      %v309 = vld [vmem:[#allocation5] sm:$0xff]
      %v310 = vld [vmem:[#allocation6] sm:$0xff]
      %v312 = vsel %vm155, %v309, 0
      %314 = vmatpush.msra.mxu0 0.0
      %315 = vmatpush.msra.mxu0 0.0
      %316 = vmatpush.msra.mxu0 0.0
      %317 = vmatpush.msra.mxu0 0.0
      %318 = vmatpush.msra.mxu0 0.0
      %319 = vmatpush.msra.mxu0 0.0
      %320 = vmatpush.msra.mxu0 0.0
      %321 = vmatpush.msra.mxu0 0.0
      %322 = vmatpush.msra.mxu0 0.0
      %323 = vmatpush.msra.mxu0 0.0
      %324 = vmatpush.msra.mxu0 0.0
      %325 = vmatpush.msra.mxu0 0.0
      %326 = vmatpush.msra.mxu0 %v289
      %327 = vmatpush.msra.mxu0 %v288
      %328 = vmatpush.msra.mxu0 %v287
      %329 = vmatpush.msra.mxu0 %v286
      %330 = vmatmul.f32.gmra.mxu0 %v312
      %v331 = vpop.f32.mrf.mxu0
      %v332 = vadd.f32 0.0, %v331
      %333 = vdwg.mxu0
      %v334 = vadd.f32 %v308, %v332
      %v335 = vxor.u32 %v334, 2147483648
      %v336 = vmul.f32 %v335, 1.442695
      %v337 = vpow.pop %v336
      %v338 = vadd.f32 %v337, 1.0
      %v339 = vrcp.pop %v338
      %v340 = vmul.f32 %v338, %v339
      %v341 = vsub.f32 1.0, %v340
      %v342 = vmul.f32 %v339, %v341
      %v343 = vadd.f32 %v339, %v342
      %vm344 = vweird.f32 %v338
      %vm345 = vweird.f32 %v339
      %vm346 = vmor %vm344, %vm345
      %v347 = vsel %vm346, %v339, %v343
      %v348 = vand.u32 2147483647, %v338
      %vm349 = vcmp.eq.f32.partialorder %v348, 8.507059e+37
      %v350 = vand.u32 %v338, 2147483648
      %v351 = vor.u32 1.1754944e-38, %v350
      %v352 = vsel %vm349, %v351, %v347
      %v353 = vmul.f32 1.0, %v352
      %v354 = vtanh.pop %v334
      %356 = vrot.lane.b32.xlu0 %v310, 32
      %v357 = vpop.permute.xlu0 %356
      %v359 = vmul.f32 %v353, %v357
      %361 = vrot.lane.b32.xlu0 %v354, 64
      %v362 = vpop.permute.xlu0 %361
      %v364 = vmul.f32 %v353, %v362
      %366 = vrot.lane.b32.xlu0 %v364, 32
      %v367 = vpop.permute.xlu0 %366
      %v369 = vadd.f32 %v359, %v367
      %v370 = vtanh.pop %v369
      %372 = vrot.lane.b32.xlu0 %v370, 64
      %v373 = vpop.permute.xlu0 %372
      %v375 = vmul.f32 %v353, %v373
      %377 = vrot.lane.b32.xlu0 %v375, 32
      %v378 = vpop.permute.xlu0 %377
      %380 = vst.msk [vmem:[#allocation5] sm:$0xff] %vm155, %v378
      %382 = vrot.lane.b32.xlu0 %v369, 96
      %v383 = vpop.permute.xlu0 %382
      %385 = vst.msk [vmem:[#allocation6] sm:$0xff] %vm155, %v383
      %s386 = scalar_lea.vmem [#allocation4], %s304
      %387 = vst.msk [vmem:[%s386] sm:$0xff] %vm155, %v378
      %s388 = scalar_lea.vmem [#allocation3], %s306
      %v389 = vld [vmem:[%s388] sm:$0xff]
      %v390 = vld [vmem:[#allocation7] sm:$0xff]
      %v391 = vld [vmem:[#allocation8] sm:$0xff]
      %v393 = vsel %vm155, %v390, 0
      %395 = vmatpush.msra.mxu0 0.0
      %396 = vmatpush.msra.mxu0 0.0
      %397 = vmatpush.msra.mxu0 0.0
      %398 = vmatpush.msra.mxu0 0.0
      %399 = vmatpush.msra.mxu0 0.0
      %400 = vmatpush.msra.mxu0 0.0
      %401 = vmatpush.msra.mxu0 0.0
      %402 = vmatpush.msra.mxu0 0.0
      %403 = vmatpush.msra.mxu0 0.0
      %404 = vmatpush.msra.mxu0 0.0
      %405 = vmatpush.msra.mxu0 0.0
      %406 = vmatpush.msra.mxu0 0.0
      %407 = vmatpush.msra.mxu0 %v293
      %408 = vmatpush.msra.mxu0 %v292
      %409 = vmatpush.msra.mxu0 %v291
      %410 = vmatpush.msra.mxu0 %v290
      %411 = vmatmul.f32.gmra.mxu0 %v393
      %v412 = vpop.f32.mrf.mxu0
      %v413 = vadd.f32 0.0, %v412
      %414 = vdwg.mxu0
      %v415 = vadd.f32 %v389, %v413
      %v416 = vxor.u32 %v415, 2147483648
      %v417 = vmul.f32 %v416, 1.442695
      %v418 = vpow.pop %v417
      %v419 = vadd.f32 %v418, 1.0
      %v420 = vrcp.pop %v419
      %v421 = vmul.f32 %v419, %v420
      %v422 = vsub.f32 1.0, %v421
      %v423 = vmul.f32 %v420, %v422
      %v424 = vadd.f32 %v420, %v423
      %vm425 = vweird.f32 %v419
      %vm426 = vweird.f32 %v420
      %vm427 = vmor %vm425, %vm426
      %v428 = vsel %vm427, %v420, %v424
      %v429 = vand.u32 2147483647, %v419
      %vm430 = vcmp.eq.f32.partialorder %v429, 8.507059e+37
      %v431 = vand.u32 %v419, 2147483648
      %v432 = vor.u32 1.1754944e-38, %v431
      %v433 = vsel %vm430, %v432, %v428
      %v434 = vmul.f32 1.0, %v433
      %v435 = vtanh.pop %v415
      %437 = vrot.lane.b32.xlu0 %v391, 32
      %v438 = vpop.permute.xlu0 %437
      %v440 = vmul.f32 %v434, %v438
      %442 = vrot.lane.b32.xlu0 %v435, 64
      %v443 = vpop.permute.xlu0 %442
      %v445 = vmul.f32 %v434, %v443
      %447 = vrot.lane.b32.xlu0 %v445, 32
      %v448 = vpop.permute.xlu0 %447
      %v450 = vadd.f32 %v440, %v448
      %v451 = vtanh.pop %v450
      %453 = vrot.lane.b32.xlu0 %v451, 64
      %v454 = vpop.permute.xlu0 %453
      %v456 = vmul.f32 %v434, %v454
      %458 = vrot.lane.b32.xlu0 %v456, 32
      %v459 = vpop.permute.xlu0 %458
      %461 = vst.msk [vmem:[#allocation7] sm:$0xff] %vm155, %v459
      %463 = vrot.lane.b32.xlu0 %v450, 96
      %v464 = vpop.permute.xlu0 %463
      %466 = vst.msk [vmem:[#allocation8] sm:$0xff] %vm155, %v464
      %467 = vrot.lane.b32.xlu0 %v456, 64
      %v468 = vpop.permute.xlu0 %467
      %s470 = scalar_lea.vmem [#allocation4], %s306
      %vm471 = vcmask 523520
      %472 = vst.msk [vmem:[%s470] sm:$0xff] %vm471, %v468
    $region82: #{tpu_custom_call.1} parent=1 // loop_footer
      %s303 = sadd.s32 1, %s299
    $region83: #{tpu_custom_call.1} parent=1 // loop_footer_branch
      %298 = sbr.rel target = $region79
    $region84: #{tpu_custom_call.1} parent=1 // loop_exit
      _
    %v473 = vld [vmem:[#allocation4] sm:$0xff]
    %v474 = vld [vmem:[#allocation4 + $0x8] sm:$0xff]
    %v475 = vld [vmem:[#allocation4 + $0x10] sm:$0xff]
    %v476 = vld [vmem:[#allocation4 + $0x18] sm:$0xff]
    %v477 = vld [vmem:[#allocation4 + $0x20] sm:$0xff]
    %v478 = vld [vmem:[#allocation4 + $0x28] sm:$0xff]
    %v479 = vld [vmem:[#allocation4 + $0x30] sm:$0xff]
    %v480 = vld [vmem:[#allocation4 + $0x38] sm:$0xff]
    %v481 = vld [vmem:[%s7] sm:$0xff]
    %v482 = vld [vmem:[%s7 + $0x8] sm:$0xff]
    %v483 = vld [vmem:[%s7 + $0x10] sm:$0xff]
    %v484 = vld [vmem:[%s7 + $0x18] sm:$0xff]
    %v485 = vld [vmem:[%s7 + $0x20] sm:$0xff]
    %v486 = vld [vmem:[%s7 + $0x28] sm:$0xff]
    %v487 = vld [vmem:[%s7 + $0x30] sm:$0xff]
    %v488 = vld [vmem:[%s7 + $0x38] sm:$0xff]
    %v489 = vld [vmem:[%s9] sm:$0x1]
    %v491 = vperm.slane %v489, 0
    %vm493 = vcmask 523264
    %v495 = vsel %vm493, %v473, 0
    %v498 = vsel %vm493, %v474, 0
    %v501 = vsel %vm493, %v475, 0
    %v504 = vsel %vm493, %v476, 0
    %v507 = vsel %vm493, %v477, 0
    %v510 = vsel %vm493, %v478, 0
    %v513 = vsel %vm493, %v479, 0
    %v516 = vsel %vm493, %v480, 0
    %518 = vmatpush.msra.mxu0 0.0
    %519 = vmatpush.msra.mxu0 0.0
    %520 = vmatpush.msra.mxu0 0.0
    %521 = vmatpush.msra.mxu0 0.0
    %522 = vmatpush.msra.mxu0 0.0
    %523 = vmatpush.msra.mxu0 0.0
    %524 = vmatpush.msra.mxu0 0.0
    %525 = vmatpush.msra.mxu0 0.0
    %526 = vmatpush.msra.mxu0 %v488
    %527 = vmatpush.msra.mxu0 %v487
    %528 = vmatpush.msra.mxu0 %v486
    %529 = vmatpush.msra.mxu0 %v485
    %530 = vmatpush.msra.mxu0 %v484
    %531 = vmatpush.msra.mxu0 %v483
    %532 = vmatpush.msra.mxu0 %v482
    %533 = vmatpush.msra.mxu0 %v481
    %534 = vmatmul.f32.gmra.mxu0 %v495
    %v535 = vpop.f32.mrf.mxu0
    %v536 = vadd.f32 %v491, %v535
    %537 = vmatmul.f32.gmra.mxu0 %v498
    %v538 = vpop.f32.mrf.mxu0
    %v539 = vadd.f32 %v491, %v538
    %540 = vmatmul.f32.gmra.mxu0 %v501
    %v541 = vpop.f32.mrf.mxu0
    %v542 = vadd.f32 %v491, %v541
    %543 = vmatmul.f32.gmra.mxu0 %v504
    %v544 = vpop.f32.mrf.mxu0
    %v545 = vadd.f32 %v491, %v544
    %546 = vmatmul.f32.gmra.mxu0 %v507
    %v547 = vpop.f32.mrf.mxu0
    %v548 = vadd.f32 %v491, %v547
    %549 = vmatmul.f32.gmra.mxu0 %v510
    %v550 = vpop.f32.mrf.mxu0
    %v551 = vadd.f32 %v491, %v550
    %552 = vmatmul.f32.gmra.mxu0 %v513
    %v553 = vpop.f32.mrf.mxu0
    %v554 = vadd.f32 %v491, %v553
    %555 = vmatmul.f32.gmra.mxu0 %v516
    %v556 = vpop.f32.mrf.mxu0
    %v557 = vadd.f32 %v491, %v556
    %558 = vdwg.mxu0
    %559 = vst [vmem:[#allocation2] sm:$0xff] %v536
    %560 = vst [vmem:[#allocation2 + $0x8] sm:$0xff] %v539
    %561 = vst [vmem:[#allocation2 + $0x10] sm:$0xff] %v542
    %562 = vst [vmem:[#allocation2 + $0x18] sm:$0xff] %v545
    %563 = vst [vmem:[#allocation2 + $0x20] sm:$0xff] %v548
    %564 = vst [vmem:[#allocation2 + $0x28] sm:$0xff] %v551
    %565 = vst [vmem:[#allocation2 + $0x30] sm:$0xff] %v554
    %566 = vst [vmem:[#allocation2 + $0x38] sm:$0xff] %v557
    %v567 = vld [vmem:[#allocation17] sm:$0xff]
    %v568 = vld [vmem:[#allocation17 + $0x8] sm:$0xff]
    %v569 = vld [vmem:[#allocation17 + $0x10] sm:$0xff]
    %v570 = vld [vmem:[#allocation17 + $0x18] sm:$0xff]
    %v571 = vld [vmem:[#allocation17 + $0x20] sm:$0xff]
    %v572 = vld [vmem:[#allocation17 + $0x28] sm:$0xff]
    %v573 = vld [vmem:[#allocation17 + $0x30] sm:$0xff]
    %v574 = vld [vmem:[#allocation17 + $0x38] sm:$0xff]
    %v575 = vld [vmem:[%s12] sm:$0x1]
    %v577 = vperm.slane %v575, 0
    %579 = vmatpush.msra.mxu0 0.0
    %580 = vmatpush.msra.mxu0 0.0
    %581 = vmatpush.msra.mxu0 0.0
    %582 = vmatpush.msra.mxu0 0.0
    %583 = vmatpush.msra.mxu0 0.0
    %584 = vmatpush.msra.mxu0 0.0
    %585 = vmatpush.msra.mxu0 0.0
    %586 = vmatpush.msra.mxu0 0.0
    %587 = vmatpush.msra.mxu0 %v574
    %588 = vmatpush.msra.mxu0 %v573
    %589 = vmatpush.msra.mxu0 %v572
    %590 = vmatpush.msra.mxu0 %v571
    %591 = vmatpush.msra.mxu0 %v570
    %592 = vmatpush.msra.mxu0 %v569
    %593 = vmatpush.msra.mxu0 %v568
    %594 = vmatpush.msra.mxu0 %v567
    %595 = vmatmul.f32.gmra.mxu0 %v495
    %v596 = vpop.f32.mrf.mxu0
    %v597 = vadd.f32 %v577, %v596
    %598 = vmatmul.f32.gmra.mxu0 %v498
    %v599 = vpop.f32.mrf.mxu0
    %v600 = vadd.f32 %v577, %v599
    %601 = vmatmul.f32.gmra.mxu0 %v501
    %v602 = vpop.f32.mrf.mxu0
    %v603 = vadd.f32 %v577, %v602
    %604 = vmatmul.f32.gmra.mxu0 %v504
    %v605 = vpop.f32.mrf.mxu0
    %v606 = vadd.f32 %v577, %v605
    %607 = vmatmul.f32.gmra.mxu0 %v507
    %v608 = vpop.f32.mrf.mxu0
    %v609 = vadd.f32 %v577, %v608
    %610 = vmatmul.f32.gmra.mxu0 %v510
    %v611 = vpop.f32.mrf.mxu0
    %v612 = vadd.f32 %v577, %v611
    %613 = vmatmul.f32.gmra.mxu0 %v513
    %v614 = vpop.f32.mrf.mxu0
    %v615 = vadd.f32 %v577, %v614
    %616 = vmatmul.f32.gmra.mxu0 %v516
    %v617 = vpop.f32.mrf.mxu0
    %v618 = vadd.f32 %v577, %v617
    %619 = vdwg.mxu0
    %620 = vst [vmem:[#allocation3] sm:$0xff] %v597
    %621 = vst [vmem:[#allocation3 + $0x8] sm:$0xff] %v600
    %622 = vst [vmem:[#allocation3 + $0x10] sm:$0xff] %v603
    %623 = vst [vmem:[#allocation3 + $0x18] sm:$0xff] %v606
    %624 = vst [vmem:[#allocation3 + $0x20] sm:$0xff] %v609
    %625 = vst [vmem:[#allocation3 + $0x28] sm:$0xff] %v612
    %626 = vst [vmem:[#allocation3 + $0x30] sm:$0xff] %v615
    %627 = vst [vmem:[#allocation3 + $0x38] sm:$0xff] %v618
    %v628 = vld [vmem:[#allocation15] sm:$0xff]
    %v629 = vld [vmem:[#allocation15 + $0x8] sm:$0xff]
    %v630 = vld [vmem:[#allocation15 + $0x10] sm:$0xff]
    %v631 = vld [vmem:[#allocation15 + $0x18] sm:$0xff]
    %v632 = vld [vmem:[#allocation18] sm:$0xff]
    %v633 = vld [vmem:[#allocation18 + $0x8] sm:$0xff]
    %v634 = vld [vmem:[#allocation18 + $0x10] sm:$0xff]
    %v635 = vld [vmem:[#allocation18 + $0x18] sm:$0xff]
    %636 = vst.msk [vmem:[#allocation5] sm:$0xff] %vm155, 0.0
    %637 = vst.msk [vmem:[#allocation6] sm:$0xff] %vm155, 0.0
    %638 = vst.msk [vmem:[#allocation7] sm:$0xff] %vm155, 0.0
    %639 = vst.msk [vmem:[#allocation8] sm:$0xff] %vm155, 0.0
    loop: start=0, step=1, limit=8
    $region85: #{tpu_custom_call.1} parent=1 // loop_pre_header
      _
    $region86: #{tpu_custom_call.1} parent=1 // loop_header
      %s641 = sphi 0, %s645
      %p642 = scmp.ge.s32.totalorder %s641, 8
    $region87: #{tpu_custom_call.1} parent=1 // loop_header_branch
      %644 = sbr.rel (%p642) target = $region91
    $region88: #{tpu_custom_call.1} parent=1 // loop_body
      %s646 = smul.u32 %s641, 8
      %s647 = ssub.s32 7, %s641
      %s648 = smul.u32 %s647, 8
      %s649 = scalar_lea.vmem [#allocation2], %s646
      %v650 = vld [vmem:[%s649] sm:$0xff]
      %v651 = vld [vmem:[#allocation5] sm:$0xff]
      %v652 = vld [vmem:[#allocation6] sm:$0xff]
      %v654 = vsel %vm155, %v651, 0
      %656 = vmatpush.msra.mxu0 0.0
      %657 = vmatpush.msra.mxu0 0.0
      %658 = vmatpush.msra.mxu0 0.0
      %659 = vmatpush.msra.mxu0 0.0
      %660 = vmatpush.msra.mxu0 0.0
      %661 = vmatpush.msra.mxu0 0.0
      %662 = vmatpush.msra.mxu0 0.0
      %663 = vmatpush.msra.mxu0 0.0
      %664 = vmatpush.msra.mxu0 0.0
      %665 = vmatpush.msra.mxu0 0.0
      %666 = vmatpush.msra.mxu0 0.0
      %667 = vmatpush.msra.mxu0 0.0
      %668 = vmatpush.msra.mxu0 %v631
      %669 = vmatpush.msra.mxu0 %v630
      %670 = vmatpush.msra.mxu0 %v629
      %671 = vmatpush.msra.mxu0 %v628
      %672 = vmatmul.f32.gmra.mxu0 %v654
      %v673 = vpop.f32.mrf.mxu0
      %v674 = vadd.f32 0.0, %v673
      %675 = vdwg.mxu0
      %v676 = vadd.f32 %v650, %v674
      %v677 = vxor.u32 %v676, 2147483648
      %v678 = vmul.f32 %v677, 1.442695
      %v679 = vpow.pop %v678
      %v680 = vadd.f32 %v679, 1.0
      %v681 = vrcp.pop %v680
      %v682 = vmul.f32 %v680, %v681
      %v683 = vsub.f32 1.0, %v682
      %v684 = vmul.f32 %v681, %v683
      %v685 = vadd.f32 %v681, %v684
      %vm686 = vweird.f32 %v680
      %vm687 = vweird.f32 %v681
      %vm688 = vmor %vm686, %vm687
      %v689 = vsel %vm688, %v681, %v685
      %v690 = vand.u32 2147483647, %v680
      %vm691 = vcmp.eq.f32.partialorder %v690, 8.507059e+37
      %v692 = vand.u32 %v680, 2147483648
      %v693 = vor.u32 1.1754944e-38, %v692
      %v694 = vsel %vm691, %v693, %v689
      %v695 = vmul.f32 1.0, %v694
      %v696 = vtanh.pop %v676
      %698 = vrot.lane.b32.xlu0 %v652, 32
      %v699 = vpop.permute.xlu0 %698
      %v701 = vmul.f32 %v695, %v699
      %703 = vrot.lane.b32.xlu0 %v696, 64
      %v704 = vpop.permute.xlu0 %703
      %v706 = vmul.f32 %v695, %v704
      %708 = vrot.lane.b32.xlu0 %v706, 32
      %v709 = vpop.permute.xlu0 %708
      %v711 = vadd.f32 %v701, %v709
      %v712 = vtanh.pop %v711
      %714 = vrot.lane.b32.xlu0 %v712, 64
      %v715 = vpop.permute.xlu0 %714
      %v717 = vmul.f32 %v695, %v715
      %719 = vrot.lane.b32.xlu0 %v717, 32
      %v720 = vpop.permute.xlu0 %719
      %722 = vst.msk [vmem:[#allocation5] sm:$0xff] %vm155, %v720
      %724 = vrot.lane.b32.xlu0 %v711, 96
      %v725 = vpop.permute.xlu0 %724
      %727 = vst.msk [vmem:[#allocation6] sm:$0xff] %vm155, %v725
      %s728 = scalar_lea.vmem [#allocation20], %s646
      %729 = vst.msk [vmem:[%s728] sm:$0xff] %vm155, %v720
      %s730 = scalar_lea.vmem [#allocation3], %s648
      %v731 = vld [vmem:[%s730] sm:$0xff]
      %v732 = vld [vmem:[#allocation7] sm:$0xff]
      %v733 = vld [vmem:[#allocation8] sm:$0xff]
      %v735 = vsel %vm155, %v732, 0
      %737 = vmatpush.msra.mxu0 0.0
      %738 = vmatpush.msra.mxu0 0.0
      %739 = vmatpush.msra.mxu0 0.0
      %740 = vmatpush.msra.mxu0 0.0
      %741 = vmatpush.msra.mxu0 0.0
      %742 = vmatpush.msra.mxu0 0.0
      %743 = vmatpush.msra.mxu0 0.0
      %744 = vmatpush.msra.mxu0 0.0
      %745 = vmatpush.msra.mxu0 0.0
      %746 = vmatpush.msra.mxu0 0.0
      %747 = vmatpush.msra.mxu0 0.0
      %748 = vmatpush.msra.mxu0 0.0
      %749 = vmatpush.msra.mxu0 %v635
      %750 = vmatpush.msra.mxu0 %v634
      %751 = vmatpush.msra.mxu0 %v633
      %752 = vmatpush.msra.mxu0 %v632
      %753 = vmatmul.f32.gmra.mxu0 %v735
      %v754 = vpop.f32.mrf.mxu0
      %v755 = vadd.f32 0.0, %v754
      %756 = vdwg.mxu0
      %v757 = vadd.f32 %v731, %v755
      %v758 = vxor.u32 %v757, 2147483648
      %v759 = vmul.f32 %v758, 1.442695
      %v760 = vpow.pop %v759
      %v761 = vadd.f32 %v760, 1.0
      %v762 = vrcp.pop %v761
      %v763 = vmul.f32 %v761, %v762
      %v764 = vsub.f32 1.0, %v763
      %v765 = vmul.f32 %v762, %v764
      %v766 = vadd.f32 %v762, %v765
      %vm767 = vweird.f32 %v761
      %vm768 = vweird.f32 %v762
      %vm769 = vmor %vm767, %vm768
      %v770 = vsel %vm769, %v762, %v766
      %v771 = vand.u32 2147483647, %v761
      %vm772 = vcmp.eq.f32.partialorder %v771, 8.507059e+37
      %v773 = vand.u32 %v761, 2147483648
      %v774 = vor.u32 1.1754944e-38, %v773
      %v775 = vsel %vm772, %v774, %v770
      %v776 = vmul.f32 1.0, %v775
      %v777 = vtanh.pop %v757
      %779 = vrot.lane.b32.xlu0 %v733, 32
      %v780 = vpop.permute.xlu0 %779
      %v782 = vmul.f32 %v776, %v780
      %784 = vrot.lane.b32.xlu0 %v777, 64
      %v785 = vpop.permute.xlu0 %784
      %v787 = vmul.f32 %v776, %v785
      %789 = vrot.lane.b32.xlu0 %v787, 32
      %v790 = vpop.permute.xlu0 %789
      %v792 = vadd.f32 %v782, %v790
      %v793 = vtanh.pop %v792
      %795 = vrot.lane.b32.xlu0 %v793, 64
      %v796 = vpop.permute.xlu0 %795
      %v798 = vmul.f32 %v776, %v796
      %800 = vrot.lane.b32.xlu0 %v798, 32
      %v801 = vpop.permute.xlu0 %800
      %803 = vst.msk [vmem:[#allocation7] sm:$0xff] %vm155, %v801
      %805 = vrot.lane.b32.xlu0 %v792, 96
      %v806 = vpop.permute.xlu0 %805
      %808 = vst.msk [vmem:[#allocation8] sm:$0xff] %vm155, %v806
      %809 = vrot.lane.b32.xlu0 %v798, 64
      %v810 = vpop.permute.xlu0 %809
      %s812 = scalar_lea.vmem [#allocation20], %s648
      %vm813 = vcmask 523520
      %814 = vst.msk [vmem:[%s812] sm:$0xff] %vm813, %v810
    $region89: #{tpu_custom_call.1} parent=1 // loop_footer
      %s645 = sadd.s32 1, %s641
    $region90: #{tpu_custom_call.1} parent=1 // loop_footer_branch
      %640 = sbr.rel target = $region86
    $region91: #{tpu_custom_call.1} parent=1 // loop_exit
      _
    // Predicated region
    $region92: #{tpu_custom_call.1} parent=1 // pred_check
      _
    $region93: #{tpu_custom_call.1} parent=1 // pred_check_branch
      %816 = sbr.rel (0) target = $region95
    $region94: #{tpu_custom_call.1} parent=1 // pred_region
      %818 = vsyncadd [#allocation11], 0
      %s819 = sshll.u32 [#allocation20], 4
      %s820 = int_to_ptr.vmem [resolvable:$true] %s819
      %s821 = sshll.u32 %s13, 4
      %s822 = int_to_ptr.hbm [resolvable:$true] %s821
      %827 = dma.vmem_to_hbm [thread:$0]  %s820, 1024, %s822, [#allocation11], 128, 128, 8
    $region95: #{tpu_custom_call.1} parent=1 // pred_fallthru
      _
    // Predicated region
    $region96: #{tpu_custom_call.1} parent=1 // pred_check
      _
    $region97: #{tpu_custom_call.1} parent=1 // pred_check_branch
      %829 = sbr.rel (0) target = $region99
    $region98: #{tpu_custom_call.1} parent=1 // pred_region
      %831 = dma.done [#allocation11], 1024
    $region99: #{tpu_custom_call.1} parent=1 // pred_fallthru
      _
    %832 = vsyncpa [#allocation10], 1
    %833 = vsyncpa [#allocation13], 1
    %834 = vsyncpa [#allocation16], 1
    %835 = vsyncpa [#allocation19], 1
    %836 = vsyncpa [#allocation11], 1

</llo_original>
